<compile_context>
chip_gen: v5e
topology: v5e:2x2
jax: 0.10.0
libtpu: 0.0.40
codegen_flags: <defaults>
</compile_context>

<pallas_src>
import functools

import jax
import jax.numpy as jnp
from jax import lax
from jax.experimental import pallas as pl
from jax.experimental.pallas import tpu as pltpu

VMEM = pl.BlockSpec(memory_space=pltpu.MemorySpace.VMEM)


# ----------------------------- Pallas kernels ----------------------------- #

def _stage1_kernel(B, A, obs_ref, w1_ref, b1_ref, w2_ref, b2_ref,
                   aw1_ref, ab1_ref, aw2_ref, ab2_ref, aw3_ref, ab3_ref,
                   th_ref, prob_ref, dist_ref):
    # fused actor_1 (MLP) + attention unit + pairwise distances: thoughts stay
    # in VMEM for all three, one launch total.
    h = jnp.maximum(
        jnp.dot(obs_ref[...], w1_ref[...], preferred_element_type=jnp.float32)
        + b1_ref[...], 0.0)
    th = jnp.maximum(
        jnp.dot(h, w2_ref[...], preferred_element_type=jnp.float32)
        + b2_ref[...], 0.0)
    th_ref[...] = th

    # attention unit (ATTN -> 1 head as VPU multiply + lane reduce, no
    # 1-column MXU op).  NOTE: (R,1)/(R,M) outputs are lane-sparse; at
    # production scale make feature dims multiples of 128.
    a = jnp.maximum(
        jnp.dot(th, aw1_ref[...], preferred_element_type=jnp.float32)
        + ab1_ref[...], 0.0)
    a = jnp.maximum(
        jnp.dot(a, aw2_ref[...], preferred_element_type=jnp.float32)
        + ab2_ref[...], 0.0)
    logit = jnp.sum(a * aw3_ref[...], axis=-1, keepdims=True) + ab3_ref[...]
    prob_ref[...] = jax.nn.sigmoid(logit)

    # pairwise squared distances:
    #   dists[b,i,j] = sq[b,j] - 2*<t_bi, t_bj> + sq[b,i]
    # computed from ONE (R,R) gram (single MXU op) whose per-batch diagonal
    # blocks are the needed distances.
    R, M = th.shape
    gram = lax.dot_general(th, th, (((1,), (1,)), ((), ())),
                           preferred_element_type=jnp.float32)        # (R, R)
    tsq = th * th
    sq_col = jnp.sum(tsq, axis=-1, keepdims=True)                     # (R, 1)
    ones_row = jnp.ones((1, M), jnp.float32)
    sq_row = lax.dot_general(ones_row, tsq, (((1,), (1,)), ((), ())),
                             preferred_element_type=jnp.float32)      # (1, R)
    full = sq_row - 2.0 * gram + sq_col                               # (R, R)
    for b in range(B):                                                # B tiny
        dist_ref[b] = full[b * A:(b + 1) * A, b * A:(b + 1) * A]


def _bilstm_kernel(K, G, H, x_ref, win_ref, bin_ref, whf_ref, whb_ref, o_ref):
    # x_ref : (K*G, 2H) time-major rows (row = t*G + g)
    # win   : (2H, 8H) = [W_in_fwd | W_in_bwd], gate columns [i, f, o | g]
    # bin   : (1, 8H) combined biases (b_ih + b_hh), same gate order
    # whf/whb: (H, 4H) recurrent weights, same gate order
    # o_ref : (K, G, 2H)  [..., :H] = forward h_t, [..., H:] = backward h_t
    gates_in = (jnp.dot(x_ref[...], win_ref[...],
                        preferred_element_type=jnp.float32) + bin_ref[...])
    whf = whf_ref[...]
    whb = whb_ref[...]

    def cell(pre, h, c, wh):
        g = pre + jnp.dot(h, wh, preferred_element_type=jnp.float32)  # (G, 4H)
        sg = jax.nn.sigmoid(g[:, 0:3 * H])      # i, f, o in one contiguous slab
        gg = jnp.tanh(g[:, 3 * H:4 * H])        # g gate
        i_g = sg[:, 0:H]
        f_g = sg[:, H:2 * H]
        o_g = sg[:, 2 * H:3 * H]
        c_new = f_g * c + i_g * gg
        h_new = o_g * jnp.tanh(c_new)
        return h_new, c_new

    zeros = jnp.zeros((G, H), jnp.float32)
    h_f, c_f = zeros, zeros
    h_b, c_b = zeros, zeros
    # forward and backward recurrences interleaved: two independent chains per
    # step so the scheduler can overlap their tiny matmuls / transcendentals.
    for s in range(K):                                   # static unroll, K tiny
        t_f = s
        t_b = K - 1 - s
        h_f, c_f = cell(gates_in[t_f * G:(t_f + 1) * G, 0:4 * H], h_f, c_f, whf)
        h_b, c_b = cell(gates_in[t_b * G:(t_b + 1) * G, 4 * H:8 * H], h_b, c_b, whb)
        o_ref[t_f, :, 0:H] = h_f
        o_ref[t_b, :, H:2 * H] = h_b


def _actor2_kernel(cur_ref, new_ref, wac_ref, wan_ref, ba_ref, wm1_ref, bm1_ref,
                   wm2_ref, bm2_ref, wl_ref, bl_ref, o_ref):
    # first layer's weight is pre-split in the wrapper so cat(current, new)
    # never materializes and no in-kernel sublane slicing is needed.
    h = (jnp.dot(cur_ref[...], wac_ref[...], preferred_element_type=jnp.float32)
         + jnp.dot(new_ref[...], wan_ref[...], preferred_element_type=jnp.float32)
         + ba_ref[...])
    h = jnp.maximum(h, 0.0)
    h = jnp.maximum(
        jnp.dot(h, wm1_ref[...], preferred_element_type=jnp.float32) + bm1_ref[...], 0.0)
    h = jnp.maximum(
        jnp.dot(h, wm2_ref[...], preferred_element_type=jnp.float32) + bm2_ref[...], 0.0)
    o_ref[...] = jnp.tanh(
        jnp.dot(h, wl_ref[...], preferred_element_type=jnp.float32) + bl_ref[...])


# ------------------------------ forward glue ------------------------------ #

def _permute_gates(w, H):
    # torch LSTM gate column blocks [i|f|g|o]  ->  kernel order [i|f|o|g]
    return jnp.concatenate(
        [w[..., 0:2 * H], w[..., 3 * H:4 * H], w[..., 2 * H:3 * H]], axis=-1)


def atoc_actor_forward(params, obs, *, agent_per_group=2, initiator_threshold=0.5):
    B, A, N = obs.shape
    M = params['a1_w2'].shape[1]
    H = M // 2
    R = B * A
    k = agent_per_group

    obs2d = obs.reshape(R, N)
    att_w3_row = params['att_w3'].reshape(1, -1)          # fc3 weight as a row

    # -- stage 1: fused actor_1 + attention + pairwise distances (one launch) --
    thoughts2d, prob2d, dists = pl.pallas_call(
        functools.partial(_stage1_kernel, B, A),
        out_shape=(jax.ShapeDtypeStruct((R, M), jnp.float32),
                   jax.ShapeDtypeStruct((R, 1), jnp.float32),
                   jax.ShapeDtypeStruct((B, A, A), jnp.float32)),
        in_specs=[VMEM] * 11,
        out_specs=(VMEM, VMEM, VMEM),
    )(obs2d, params['a1_w1'], params['a1_b1'], params['a1_w2'], params['a1_b2'],
      params['att_w1'], params['att_b1'], params['att_w2'], params['att_b2'],
      att_w3_row, params['att_b3'])

    current_thoughts = thoughts2d.reshape(B, A, M)
    old_thoughts = current_thoughts        # .clone().detach() is value-identical
    init_prob = prob2d.reshape(B, A)
    is_initiator = init_prob > initiator_threshold

    # group = agent_per_group nearest agents (incl. self); torch: argsort()[:k]
    # TODO(synk): tie-breaking of equal distances may differ from torch.argsort.
    _, nn_idx = lax.top_k(-dists, k)                      # (B, A, k)
    member_idx = jnp.sort(nn_idx, axis=-1)                # ascending agent order
    group = (jax.nn.one_hot(nn_idx, A, dtype=jnp.float32).sum(axis=2)
             * is_initiator[..., None].astype(jnp.float32))

    # gather group members' (old) thoughts directly in the time-major layout
    # the LSTM kernel wants (transpose the tiny int index array, not the
    # activations): row = t*R + (b*A + i).
    member_rows = member_idx + (jnp.arange(B, dtype=member_idx.dtype) * A)[:, None, None]
    rows_tm = jnp.transpose(member_rows, (2, 0, 1)).reshape(k * R)
    x_tm = jnp.take(thoughts2d, rows_tm, axis=0)          # (k*R, M)

    # combined per-direction input weights/biases (b_ih + b_hh folded), gate
    # columns pre-permuted to [i, f, o | g] for the kernel.
    w_in = jnp.concatenate([_permute_gates(params['lstm_wif'], H),
                            _permute_gates(params['lstm_wib'], H)], axis=1)  # (M, 8H)
    b_in = jnp.concatenate([_permute_gates(params['lstm_bf'], H),
                            _permute_gates(params['lstm_bb'], H)], axis=1)   # (1, 8H)
    whf = _permute_gates(params['lstm_whf'], H)
    whb = _permute_gates(params['lstm_whb'], H)

    lstm_out = pl.pallas_call(
        functools.partial(_bilstm_kernel, k, R, H),
        out_shape=jax.ShapeDtypeStruct((k, R, M), jnp.float32),
        in_specs=[VMEM] * 5,
        out_specs=VMEM,
    )(x_tm, w_in, b_in, whf, whb)
    # (k, R, 2H) -> (R, k, 2H) -> (B, A, k, M)  (fwd half first, as in torch)
    integrated = jnp.transpose(lstm_out, (1, 0, 2)).reshape(B, A, k, M)

    # -- vectorized "last writer wins" scatter (replaces A*k serialized .at[].set) --
    # torch order: i ascending, then members ascending -> the value written to
    # agent j comes from the valid (i, s) pair with the largest priority i*k+s.
    Ak = A * k
    flat_idx = member_idx.reshape(B, Ak)                  # target agent per slot
    flat_val = integrated.reshape(B, Ak, M)
    prio = jnp.where(is_initiator[:, :, None],
                     jnp.arange(Ak, dtype=jnp.int32).reshape(A, k)[None],
                     -1).reshape(B, Ak)
    match = flat_idx[:, None, :] == jnp.arange(A, dtype=flat_idx.dtype)[None, :, None]
    score = jnp.where(match, prio[:, None, :], -1)        # (B, A, A*k)
    winner = jnp.argmax(score, axis=-1)                   # (B, A)
    has_writer = jnp.max(score, axis=-1) >= 0             # (B, A)
    picked = jnp.take_along_axis(
        flat_val, jnp.broadcast_to(winner[:, :, None], (B, A, M)), axis=1)
    new_thoughts = jnp.where(has_writer[..., None], picked, old_thoughts)

    # -- stage 3: actor_2 (first-layer weight split into halves in the wrapper) --
    act_dim = params['a2_wl'].shape[1]
    wa_cur = params['a2_wa'][0:M, :]
    wa_new = params['a2_wa'][M:2 * M, :]
    action = pl.pallas_call(
        _actor2_kernel,
        out_shape=jax.ShapeDtypeStruct((R, act_dim), jnp.float32),
        in_specs=[VMEM] * 11,
        out_specs=VMEM,
    )(thoughts2d, new_thoughts.reshape(R, M),
      wa_cur, wa_new, params['a2_ba'], params['a2_wm1'], params['a2_bm1'],
      params['a2_wm2'], params['a2_bm2'], params['a2_wl'], params['a2_bl']
      ).reshape(B, A, act_dim)

    return {
        'action': action,
        'group': group,
        'initiator_prob': init_prob,
        'is_initiator': is_initiator,
        'new_thoughts': new_thoughts,
        'old_thoughts': old_thoughts,
    }


# ------------------------- deterministic parameters ------------------------ #

def init_params(key, obs_dim, thought, attn_hidden, act_dim,
                actor1_emb=None, actor2_emb=None):
    e1 = actor1_emb or thought
    e2 = actor2_emb or thought
    H = thought // 2
    keys = jax.random.split(key, 16)

    def dense(k, i, o, scale=0.2):
        kw, kb = jax.random.split(k)
        return (scale * jax.random.normal(kw, (i, o), jnp.float32),
                scale * jax.random.normal(kb, (1, o), jnp.float32))

    p = {}
    p['a1_w1'], p['a1_b1'] = dense(keys[0], obs_dim, e1)
    p['a1_w2'], p['a1_b2'] = dense(keys[1], e1, thought)
    p['att_w1'], p['att_b1'] = dense(keys[2], thought, attn_hidden)
    p['att_w2'], p['att_b2'] = dense(keys[3], attn_hidden, attn_hidden)
    p['att_w3'], p['att_b3'] = dense(keys[4], attn_hidden, 1)
    p['a2_wa'], p['a2_ba'] = dense(keys[5], 2 * thought, e2)
    p['a2_wm1'], p['a2_bm1'] = dense(keys[6], e2, e2)
    p['a2_wm2'], p['a2_bm2'] = dense(keys[7], e2, e2)
    p['a2_wl'], p['a2_bl'] = dense(keys[8], e2, act_dim)
    # bi-LSTM: combined bias = b_ih + b_hh, weights stored as (in, 4H); gate
    # column order i,f,g,o matches torch.nn.LSTM (permuted in the wrapper).
    p['lstm_wif'], p['lstm_bf'] = dense(keys[9], thought, 4 * H)
    p['lstm_whf'], _ = dense(keys[10], H, 4 * H)
    p['lstm_wib'], p['lstm_bb'] = dense(keys[11], thought, 4 * H)
    p['lstm_whb'], _ = dense(keys[12], H, 4 * H)
    return p


# ----------------------------------- main ---------------------------------- #

if __name__ == "__main__":
    B, A = 2, 4                  # batch, n_agent
    OBS = 32                     # obs_shape
    THOUGHT = 16                 # thought_size (even)
    ACT = 8                      # action_shape
    ATTN = 32                    # attention_embedding_size
    K_GROUP = 2                  # agent_per_group
    THRESH = 0.5

    key = jax.random.PRNGKey(0)
    k_obs, k_par = jax.random.split(key)
    obs = jax.random.normal(k_obs, (B, A, OBS), jnp.float32)
    params = init_params(k_par, OBS, THOUGHT, ATTN, ACT)

    fwd = jax.jit(functools.partial(
        atoc_actor_forward, agent_per_group=K_GROUP, initiator_threshold=THRESH))
    out = fwd(params, obs)
    jax.block_until_ready(out)

    assert out['action'].shape == (B, A, ACT)
    assert out['group'].shape == (B, A, A)
    assert out['initiator_prob'].shape == (B, A)
    assert out['is_initiator'].shape == (B, A)
    assert out['new_thoughts'].shape == (B, A, THOUGHT)
    assert out['old_thoughts'].shape == (B, A, THOUGHT)
    assert bool(jnp.all(jnp.isfinite(out['action'])))
    print("KERNEL_OK")
</pallas_src>

<mosaic_0001>
module attributes {stable_mosaic.version = 11 : i64} {
  func.func @_stage1_kernel(%arg0: memref<8x32xf32, #tpu.memory_space<vmem>>, %arg1: memref<32x16xf32, #tpu.memory_space<vmem>>, %arg2: memref<1x16xf32, #tpu.memory_space<vmem>>, %arg3: memref<16x16xf32, #tpu.memory_space<vmem>>, %arg4: memref<1x16xf32, #tpu.memory_space<vmem>>, %arg5: memref<16x32xf32, #tpu.memory_space<vmem>>, %arg6: memref<1x32xf32, #tpu.memory_space<vmem>>, %arg7: memref<32x32xf32, #tpu.memory_space<vmem>>, %arg8: memref<1x32xf32, #tpu.memory_space<vmem>>, %arg9: memref<1x32xf32, #tpu.memory_space<vmem>>, %arg10: memref<1x1xf32, #tpu.memory_space<vmem>>, %arg11: memref<8x16xf32, #tpu.memory_space<vmem>>, %arg12: memref<8x1xf32, #tpu.memory_space<vmem>>, %arg13: memref<2x4x4xf32, #tpu.memory_space<vmem>>) attributes {dimension_semantics = [], scalar_prefetch = 0 : i64, scratch_operands = 0 : i64, tpu.core_type = #tpu.core_type<tc>} {
    %c0 = arith.constant 0 : index
    %c0_0 = arith.constant 0 : index
    %0 = vector.load %arg0[%c0, %c0_0] : memref<8x32xf32, #tpu.memory_space<vmem>>, vector<8x32xf32>
    %c0_1 = arith.constant 0 : index
    %c0_2 = arith.constant 0 : index
    %1 = vector.load %arg1[%c0_1, %c0_2] : memref<32x16xf32, #tpu.memory_space<vmem>>, vector<32x16xf32>
    %cst = arith.constant dense<0.000000e+00> : vector<8x16xf32>
    %2 = tpu.matmul %0, %1, %cst {dimension_numbers = #tpu.dot_dimension_numbers<[1], [0], [0], [1], [0, 0, 1, 1], [], []>} : vector<8x32xf32>, vector<32x16xf32>, vector<8x16xf32> -> vector<8x16xf32>
    %c0_3 = arith.constant 0 : index
    %c0_4 = arith.constant 0 : index
    %3 = vector.load %arg2[%c0_3, %c0_4] : memref<1x16xf32, #tpu.memory_space<vmem>>, vector<1x16xf32>
    %4 = vector.broadcast %3 : vector<1x16xf32> to vector<8x16xf32>
    %5 = arith.addf %2, %4 : vector<8x16xf32>
    %cst_5 = arith.constant 0.000000e+00 : f32
    %6 = vector.broadcast %cst_5 : f32 to vector<8x16xf32>
    %7 = arith.maximumf %5, %6 : vector<8x16xf32>
    %c0_6 = arith.constant 0 : index
    %c0_7 = arith.constant 0 : index
    %8 = vector.load %arg3[%c0_6, %c0_7] : memref<16x16xf32, #tpu.memory_space<vmem>>, vector<16x16xf32>
    %cst_8 = arith.constant dense<0.000000e+00> : vector<8x16xf32>
    %9 = tpu.matmul %7, %8, %cst_8 {dimension_numbers = #tpu.dot_dimension_numbers<[1], [0], [0], [1], [0, 0, 1, 1], [], []>} : vector<8x16xf32>, vector<16x16xf32>, vector<8x16xf32> -> vector<8x16xf32>
    %c0_9 = arith.constant 0 : index
    %c0_10 = arith.constant 0 : index
    %10 = vector.load %arg4[%c0_9, %c0_10] : memref<1x16xf32, #tpu.memory_space<vmem>>, vector<1x16xf32>
    %11 = vector.broadcast %10 : vector<1x16xf32> to vector<8x16xf32>
    %12 = arith.addf %9, %11 : vector<8x16xf32>
    %cst_11 = arith.constant 0.000000e+00 : f32
    %13 = vector.broadcast %cst_11 : f32 to vector<8x16xf32>
    %14 = arith.maximumf %12, %13 : vector<8x16xf32>
    %c0_12 = arith.constant 0 : index
    %c0_13 = arith.constant 0 : index
    %15 = vector.load %arg11[%c0_12, %c0_13] : memref<8x16xf32, #tpu.memory_space<vmem>>, vector<8x16xf32>
    tpu.vector_store %arg11[%c0_12, %c0_13], %14 {strides = array<i32>} : memref<8x16xf32, #tpu.memory_space<vmem>>, vector<8x16xf32>,
    %c0_14 = arith.constant 0 : index
    %c0_15 = arith.constant 0 : index
    %16 = vector.load %arg5[%c0_14, %c0_15] : memref<16x32xf32, #tpu.memory_space<vmem>>, vector<16x32xf32>
    %cst_16 = arith.constant dense<0.000000e+00> : vector<8x32xf32>
    %17 = tpu.matmul %14, %16, %cst_16 {dimension_numbers = #tpu.dot_dimension_numbers<[1], [0], [0], [1], [0, 0, 1, 1], [], []>} : vector<8x16xf32>, vector<16x32xf32>, vector<8x32xf32> -> vector<8x32xf32>
    %c0_17 = arith.constant 0 : index
    %c0_18 = arith.constant 0 : index
    %18 = vector.load %arg6[%c0_17, %c0_18] : memref<1x32xf32, #tpu.memory_space<vmem>>, vector<1x32xf32>
    %19 = vector.broadcast %18 : vector<1x32xf32> to vector<8x32xf32>
    %20 = arith.addf %17, %19 : vector<8x32xf32>
    %cst_19 = arith.constant 0.000000e+00 : f32
    %21 = vector.broadcast %cst_19 : f32 to vector<8x32xf32>
    %22 = arith.maximumf %20, %21 : vector<8x32xf32>
    %c0_20 = arith.constant 0 : index
    %c0_21 = arith.constant 0 : index
    %23 = vector.load %arg7[%c0_20, %c0_21] : memref<32x32xf32, #tpu.memory_space<vmem>>, vector<32x32xf32>
    %cst_22 = arith.constant dense<0.000000e+00> : vector<8x32xf32>
    %24 = tpu.matmul %22, %23, %cst_22 {dimension_numbers = #tpu.dot_dimension_numbers<[1], [0], [0], [1], [0, 0, 1, 1], [], []>} : vector<8x32xf32>, vector<32x32xf32>, vector<8x32xf32> -> vector<8x32xf32>
    %c0_23 = arith.constant 0 : index
    %c0_24 = arith.constant 0 : index
    %25 = vector.load %arg8[%c0_23, %c0_24] : memref<1x32xf32, #tpu.memory_space<vmem>>, vector<1x32xf32>
    %26 = vector.broadcast %25 : vector<1x32xf32> to vector<8x32xf32>
    %27 = arith.addf %24, %26 : vector<8x32xf32>
    %cst_25 = arith.constant 0.000000e+00 : f32
    %28 = vector.broadcast %cst_25 : f32 to vector<8x32xf32>
    %29 = arith.maximumf %27, %28 : vector<8x32xf32>
    %c0_26 = arith.constant 0 : index
    %c0_27 = arith.constant 0 : index
    %30 = vector.load %arg9[%c0_26, %c0_27] : memref<1x32xf32, #tpu.memory_space<vmem>>, vector<1x32xf32>
    %31 = vector.broadcast %30 : vector<1x32xf32> to vector<8x32xf32>
    %32 = arith.mulf %29, %31 : vector<8x32xf32>
    %cst_28 = arith.constant dense<0.000000e+00> : vector<8xf32>
    %33 = vector.multi_reduction <add>, %32, %cst_28 [1] : vector<8x32xf32> to vector<8xf32>
    %34 = vector.shape_cast %33 : vector<8xf32> to vector<8x1xf32>
    %c0_29 = arith.constant 0 : index
    %c0_30 = arith.constant 0 : index
    %35 = vector.load %arg10[%c0_29, %c0_30] : memref<1x1xf32, #tpu.memory_space<vmem>>, vector<1x1xf32>
    %36 = vector.broadcast %35 : vector<1x1xf32> to vector<8x1xf32>
    %37 = arith.addf %34, %36 : vector<8x1xf32>
    %38 = arith.negf %37 : vector<8x1xf32>
    %39 = math.exp %38 : vector<8x1xf32>
    %cst_31 = arith.constant 1.000000e+00 : f32
    %40 = vector.broadcast %cst_31 : f32 to vector<8x1xf32>
    %41 = arith.addf %40, %39 : vector<8x1xf32>
    %42 = arith.divf %40, %41 : vector<8x1xf32>
    %c0_32 = arith.constant 0 : index
    %c0_33 = arith.constant 0 : index
    %43 = vector.load %arg12[%c0_32, %c0_33] : memref<8x1xf32, #tpu.memory_space<vmem>>, vector<8x1xf32>
    tpu.vector_store %arg12[%c0_32, %c0_33], %42 {strides = array<i32>} : memref<8x1xf32, #tpu.memory_space<vmem>>, vector<8x1xf32>,
    %cst_34 = arith.constant dense<0.000000e+00> : vector<8x8xf32>
    %44 = tpu.matmul %14, %14, %cst_34 {dimension_numbers = #tpu.dot_dimension_numbers<[1], [1], [0], [0], [0, 0, 1, 0], [], []>} : vector<8x16xf32>, vector<8x16xf32>, vector<8x8xf32> -> vector<8x8xf32>
    %45 = arith.mulf %14, %14 : vector<8x16xf32>
    %cst_35 = arith.constant dense<0.000000e+00> : vector<8xf32>
    %46 = vector.multi_reduction <add>, %45, %cst_35 [1] : vector<8x16xf32> to vector<8xf32>
    %47 = vector.shape_cast %46 : vector<8xf32> to vector<8x1xf32>
    %cst_36 = arith.constant 1.000000e+00 : f32
    %48 = vector.broadcast %cst_36 : f32 to vector<1x16xf32>
    %cst_37 = arith.constant dense<0.000000e+00> : vector<1x8xf32>
    %49 = tpu.matmul %48, %45, %cst_37 {dimension_numbers = #tpu.dot_dimension_numbers<[1], [1], [0], [0], [0, 0, 1, 0], [], []>} : vector<1x16xf32>, vector<8x16xf32>, vector<1x8xf32> -> vector<1x8xf32>
    %cst_38 = arith.constant 2.000000e+00 : f32
    %50 = vector.broadcast %cst_38 : f32 to vector<8x8xf32>
    %51 = arith.mulf %50, %44 : vector<8x8xf32>
    %52 = vector.broadcast %49 : vector<1x8xf32> to vector<8x8xf32>
    %53 = arith.subf %52, %51 : vector<8x8xf32>
    %54 = vector.broadcast %47 : vector<8x1xf32> to vector<8x8xf32>
    %55 = arith.addf %53, %54 : vector<8x8xf32>
    %56 = vector.extract_strided_slice %55 {offsets = [0, 0], sizes = [4, 4], strides = [1, 1]} : vector<8x8xf32> to vector<4x4xf32>
    %c0_39 = arith.constant 0 : index
    %c0_40 = arith.constant 0 : index
    %c0_41 = arith.constant 0 : index
    %57 = vector.load %arg13[%c0_39, %c0_40, %c0_41] : memref<2x4x4xf32, #tpu.memory_space<vmem>>, vector<1x4x4xf32>
    %58 = vector.shape_cast %57 : vector<1x4x4xf32> to vector<4x4xf32>
    %59 = vector.shape_cast %56 : vector<4x4xf32> to vector<1x4x4xf32>
    tpu.vector_store %arg13[%c0_39, %c0_40, %c0_41], %59 {strides = array<i32>} : memref<2x4x4xf32, #tpu.memory_space<vmem>>, vector<1x4x4xf32>,
    %60 = vector.extract_strided_slice %55 {offsets = [4, 4], sizes = [4, 4], strides = [1, 1]} : vector<8x8xf32> to vector<4x4xf32>
    %c1 = arith.constant 1 : index
    %c0_42 = arith.constant 0 : index
    %c0_43 = arith.constant 0 : index
    %61 = vector.load %arg13[%c1, %c0_42, %c0_43] : memref<2x4x4xf32, #tpu.memory_space<vmem>>, vector<1x4x4xf32>
    %62 = vector.shape_cast %61 : vector<1x4x4xf32> to vector<4x4xf32>
    %63 = vector.shape_cast %60 : vector<4x4xf32> to vector<1x4x4xf32>
    tpu.vector_store %arg13[%c1, %c0_42, %c0_43], %63 {strides = array<i32>} : memref<2x4x4xf32, #tpu.memory_space<vmem>>, vector<1x4x4xf32>,
    return
  }
}

module attributes {stable_mosaic.version = 11 : i64} {
  func.func @_bilstm_kernel(%arg0: memref<16x16xf32, #tpu.memory_space<vmem>>, %arg1: memref<16x64xf32, #tpu.memory_space<vmem>>, %arg2: memref<1x64xf32, #tpu.memory_space<vmem>>, %arg3: memref<8x32xf32, #tpu.memory_space<vmem>>, %arg4: memref<8x32xf32, #tpu.memory_space<vmem>>, %arg5: memref<2x8x16xf32, #tpu.memory_space<vmem>>) attributes {dimension_semantics = [], scalar_prefetch = 0 : i64, scratch_operands = 0 : i64, tpu.core_type = #tpu.core_type<tc>} {
    %c0 = arith.constant 0 : index
    %c0_0 = arith.constant 0 : index
    %0 = vector.load %arg0[%c0, %c0_0] : memref<16x16xf32, #tpu.memory_space<vmem>>, vector<16x16xf32>
    %c0_1 = arith.constant 0 : index
    %c0_2 = arith.constant 0 : index
    %1 = vector.load %arg1[%c0_1, %c0_2] : memref<16x64xf32, #tpu.memory_space<vmem>>, vector<16x64xf32>
    %cst = arith.constant dense<0.000000e+00> : vector<16x64xf32>
    %2 = tpu.matmul %0, %1, %cst {dimension_numbers = #tpu.dot_dimension_numbers<[1], [0], [0], [1], [0, 0, 1, 1], [], []>} : vector<16x16xf32>, vector<16x64xf32>, vector<16x64xf32> -> vector<16x64xf32>
    %c0_3 = arith.constant 0 : index
    %c0_4 = arith.constant 0 : index
    %3 = vector.load %arg2[%c0_3, %c0_4] : memref<1x64xf32, #tpu.memory_space<vmem>>, vector<1x64xf32>
    %4 = vector.broadcast %3 : vector<1x64xf32> to vector<16x64xf32>
    %5 = arith.addf %2, %4 : vector<16x64xf32>
    %c0_5 = arith.constant 0 : index
    %c0_6 = arith.constant 0 : index
    %6 = vector.load %arg3[%c0_5, %c0_6] : memref<8x32xf32, #tpu.memory_space<vmem>>, vector<8x32xf32>
    %c0_7 = arith.constant 0 : index
    %c0_8 = arith.constant 0 : index
    %7 = vector.load %arg4[%c0_7, %c0_8] : memref<8x32xf32, #tpu.memory_space<vmem>>, vector<8x32xf32>
    %cst_9 = arith.constant 0.000000e+00 : f32
    %8 = vector.broadcast %cst_9 : f32 to vector<8x8xf32>
    %9 = vector.extract_strided_slice %5 {offsets = [0, 0], sizes = [8, 32], strides = [1, 1]} : vector<16x64xf32> to vector<8x32xf32>
    %cst_10 = arith.constant dense<0.000000e+00> : vector<8x32xf32>
    %10 = tpu.matmul %8, %6, %cst_10 {dimension_numbers = #tpu.dot_dimension_numbers<[1], [0], [0], [1], [0, 0, 1, 1], [], []>} : vector<8x8xf32>, vector<8x32xf32>, vector<8x32xf32> -> vector<8x32xf32>
    %11 = arith.addf %9, %10 : vector<8x32xf32>
    %12 = vector.extract_strided_slice %11 {offsets = [0, 0], sizes = [8, 24], strides = [1, 1]} : vector<8x32xf32> to vector<8x24xf32>
    %13 = arith.negf %12 : vector<8x24xf32>
    %14 = math.exp %13 : vector<8x24xf32>
    %cst_11 = arith.constant 1.000000e+00 : f32
    %15 = vector.broadcast %cst_11 : f32 to vector<8x24xf32>
    %16 = arith.addf %15, %14 : vector<8x24xf32>
    %17 = arith.divf %15, %16 : vector<8x24xf32>
    %18 = vector.extract_strided_slice %11 {offsets = [0, 24], sizes = [8, 8], strides = [1, 1]} : vector<8x32xf32> to vector<8x8xf32>
    %19 = math.tanh %18 : vector<8x8xf32>
    %20 = vector.extract_strided_slice %17 {offsets = [0, 0], sizes = [8, 8], strides = [1, 1]} : vector<8x24xf32> to vector<8x8xf32>
    %21 = vector.extract_strided_slice %17 {offsets = [0, 8], sizes = [8, 8], strides = [1, 1]} : vector<8x24xf32> to vector<8x8xf32>
    %22 = vector.extract_strided_slice %17 {offsets = [0, 16], sizes = [8, 8], strides = [1, 1]} : vector<8x24xf32> to vector<8x8xf32>
    %23 = arith.mulf %21, %8 : vector<8x8xf32>
    %24 = arith.mulf %20, %19 : vector<8x8xf32>
    %25 = arith.addf %23, %24 : vector<8x8xf32>
    %26 = math.tanh %25 : vector<8x8xf32>
    %27 = arith.mulf %22, %26 : vector<8x8xf32>
    %28 = vector.extract_strided_slice %5 {offsets = [8, 32], sizes = [8, 32], strides = [1, 1]} : vector<16x64xf32> to vector<8x32xf32>
    %cst_12 = arith.constant dense<0.000000e+00> : vector<8x32xf32>
    %29 = tpu.matmul %8, %7, %cst_12 {dimension_numbers = #tpu.dot_dimension_numbers<[1], [0], [0], [1], [0, 0, 1, 1], [], []>} : vector<8x8xf32>, vector<8x32xf32>, vector<8x32xf32> -> vector<8x32xf32>
    %30 = arith.addf %28, %29 : vector<8x32xf32>
    %31 = vector.extract_strided_slice %30 {offsets = [0, 0], sizes = [8, 24], strides = [1, 1]} : vector<8x32xf32> to vector<8x24xf32>
    %32 = arith.negf %31 : vector<8x24xf32>
    %33 = math.exp %32 : vector<8x24xf32>
    %cst_13 = arith.constant 1.000000e+00 : f32
    %34 = vector.broadcast %cst_13 : f32 to vector<8x24xf32>
    %35 = arith.addf %34, %33 : vector<8x24xf32>
    %36 = arith.divf %34, %35 : vector<8x24xf32>
    %37 = vector.extract_strided_slice %30 {offsets = [0, 24], sizes = [8, 8], strides = [1, 1]} : vector<8x32xf32> to vector<8x8xf32>
    %38 = math.tanh %37 : vector<8x8xf32>
    %39 = vector.extract_strided_slice %36 {offsets = [0, 0], sizes = [8, 8], strides = [1, 1]} : vector<8x24xf32> to vector<8x8xf32>
    %40 = vector.extract_strided_slice %36 {offsets = [0, 8], sizes = [8, 8], strides = [1, 1]} : vector<8x24xf32> to vector<8x8xf32>
    %41 = vector.extract_strided_slice %36 {offsets = [0, 16], sizes = [8, 8], strides = [1, 1]} : vector<8x24xf32> to vector<8x8xf32>
    %42 = arith.mulf %40, %8 : vector<8x8xf32>
    %43 = arith.mulf %39, %38 : vector<8x8xf32>
    %44 = arith.addf %42, %43 : vector<8x8xf32>
    %45 = math.tanh %44 : vector<8x8xf32>
    %46 = arith.mulf %41, %45 : vector<8x8xf32>
    %c0_14 = arith.constant 0 : index
    %c0_15 = arith.constant 0 : index
    %c0_16 = arith.constant 0 : index
    %47 = vector.load %arg5[%c0_14, %c0_15, %c0_16] : memref<2x8x16xf32, #tpu.memory_space<vmem>>, vector<1x8x8xf32>
    %48 = vector.shape_cast %47 : vector<1x8x8xf32> to vector<8x8xf32>
    %49 = vector.shape_cast %27 : vector<8x8xf32> to vector<1x8x8xf32>
    tpu.vector_store %arg5[%c0_14, %c0_15, %c0_16], %49 {strides = array<i32>} : memref<2x8x16xf32, #tpu.memory_space<vmem>>, vector<1x8x8xf32>,
    %c1 = arith.constant 1 : index
    %c0_17 = arith.constant 0 : index
    %c8 = arith.constant 8 : index
    %50 = vector.load %arg5[%c1, %c0_17, %c8] : memref<2x8x16xf32, #tpu.memory_space<vmem>>, vector<1x8x8xf32>
    %51 = vector.shape_cast %50 : vector<1x8x8xf32> to vector<8x8xf32>
    %52 = vector.shape_cast %46 : vector<8x8xf32> to vector<1x8x8xf32>
    tpu.vector_store %arg5[%c1, %c0_17, %c8], %52 {strides = array<i32>} : memref<2x8x16xf32, #tpu.memory_space<vmem>>, vector<1x8x8xf32>,
    %53 = vector.extract_strided_slice %5 {offsets = [8, 0], sizes = [8, 32], strides = [1, 1]} : vector<16x64xf32> to vector<8x32xf32>
    %cst_18 = arith.constant dense<0.000000e+00> : vector<8x32xf32>
    %54 = tpu.matmul %27, %6, %cst_18 {dimension_numbers = #tpu.dot_dimension_numbers<[1], [0], [0], [1], [0, 0, 1, 1], [], []>} : vector<8x8xf32>, vector<8x32xf32>, vector<8x32xf32> -> vector<8x32xf32>
    %55 = arith.addf %53, %54 : vector<8x32xf32>
    %56 = vector.extract_strided_slice %55 {offsets = [0, 0], sizes = [8, 24], strides = [1, 1]} : vector<8x32xf32> to vector<8x24xf32>
    %57 = arith.negf %56 : vector<8x24xf32>
    %58 = math.exp %57 : vector<8x24xf32>
    %cst_19 = arith.constant 1.000000e+00 : f32
    %59 = vector.broadcast %cst_19 : f32 to vector<8x24xf32>
    %60 = arith.addf %59, %58 : vector<8x24xf32>
    %61 = arith.divf %59, %60 : vector<8x24xf32>
    %62 = vector.extract_strided_slice %55 {offsets = [0, 24], sizes = [8, 8], strides = [1, 1]} : vector<8x32xf32> to vector<8x8xf32>
    %63 = math.tanh %62 : vector<8x8xf32>
    %64 = vector.extract_strided_slice %61 {offsets = [0, 0], sizes = [8, 8], strides = [1, 1]} : vector<8x24xf32> to vector<8x8xf32>
    %65 = vector.extract_strided_slice %61 {offsets = [0, 8], sizes = [8, 8], strides = [1, 1]} : vector<8x24xf32> to vector<8x8xf32>
    %66 = vector.extract_strided_slice %61 {offsets = [0, 16], sizes = [8, 8], strides = [1, 1]} : vector<8x24xf32> to vector<8x8xf32>
    %67 = arith.mulf %65, %25 : vector<8x8xf32>
    %68 = arith.mulf %64, %63 : vector<8x8xf32>
    %69 = arith.addf %67, %68 : vector<8x8xf32>
    %70 = math.tanh %69 : vector<8x8xf32>
    %71 = arith.mulf %66, %70 : vector<8x8xf32>
    %72 = vector.extract_strided_slice %5 {offsets = [0, 32], sizes = [8, 32], strides = [1, 1]} : vector<16x64xf32> to vector<8x32xf32>
    %cst_20 = arith.constant dense<0.000000e+00> : vector<8x32xf32>
    %73 = tpu.matmul %46, %7, %cst_20 {dimension_numbers = #tpu.dot_dimension_numbers<[1], [0], [0], [1], [0, 0, 1, 1], [], []>} : vector<8x8xf32>, vector<8x32xf32>, vector<8x32xf32> -> vector<8x32xf32>
    %74 = arith.addf %72, %73 : vector<8x32xf32>
    %75 = vector.extract_strided_slice %74 {offsets = [0, 0], sizes = [8, 24], strides = [1, 1]} : vector<8x32xf32> to vector<8x24xf32>
    %76 = arith.negf %75 : vector<8x24xf32>
    %77 = math.exp %76 : vector<8x24xf32>
    %cst_21 = arith.constant 1.000000e+00 : f32
    %78 = vector.broadcast %cst_21 : f32 to vector<8x24xf32>
    %79 = arith.addf %78, %77 : vector<8x24xf32>
    %80 = arith.divf %78, %79 : vector<8x24xf32>
    %81 = vector.extract_strided_slice %74 {offsets = [0, 24], sizes = [8, 8], strides = [1, 1]} : vector<8x32xf32> to vector<8x8xf32>
    %82 = math.tanh %81 : vector<8x8xf32>
    %83 = vector.extract_strided_slice %80 {offsets = [0, 0], sizes = [8, 8], strides = [1, 1]} : vector<8x24xf32> to vector<8x8xf32>
    %84 = vector.extract_strided_slice %80 {offsets = [0, 8], sizes = [8, 8], strides = [1, 1]} : vector<8x24xf32> to vector<8x8xf32>
    %85 = vector.extract_strided_slice %80 {offsets = [0, 16], sizes = [8, 8], strides = [1, 1]} : vector<8x24xf32> to vector<8x8xf32>
    %86 = arith.mulf %84, %44 : vector<8x8xf32>
    %87 = arith.mulf %83, %82 : vector<8x8xf32>
    %88 = arith.addf %86, %87 : vector<8x8xf32>
    %89 = math.tanh %88 : vector<8x8xf32>
    %90 = arith.mulf %85, %89 : vector<8x8xf32>
    %c1_22 = arith.constant 1 : index
    %c0_23 = arith.constant 0 : index
    %c0_24 = arith.constant 0 : index
    %91 = vector.load %arg5[%c1_22, %c0_23, %c0_24] : memref<2x8x16xf32, #tpu.memory_space<vmem>>, vector<1x8x8xf32>
    %92 = vector.shape_cast %91 : vector<1x8x8xf32> to vector<8x8xf32>
    %93 = vector.shape_cast %71 : vector<8x8xf32> to vector<1x8x8xf32>
    tpu.vector_store %arg5[%c1_22, %c0_23, %c0_24], %93 {strides = array<i32>} : memref<2x8x16xf32, #tpu.memory_space<vmem>>, vector<1x8x8xf32>,
    %c0_25 = arith.constant 0 : index
    %c0_26 = arith.constant 0 : index
    %c8_27 = arith.constant 8 : index
    %94 = vector.load %arg5[%c0_25, %c0_26, %c8_27] : memref<2x8x16xf32, #tpu.memory_space<vmem>>, vector<1x8x8xf32>
    %95 = vector.shape_cast %94 : vector<1x8x8xf32> to vector<8x8xf32>
    %96 = vector.shape_cast %90 : vector<8x8xf32> to vector<1x8x8xf32>
    tpu.vector_store %arg5[%c0_25, %c0_26, %c8_27], %96 {strides = array<i32>} : memref<2x8x16xf32, #tpu.memory_space<vmem>>, vector<1x8x8xf32>,
    return
  }
}

module attributes {stable_mosaic.version = 11 : i64} {
  func.func @_actor2_kernel(%arg0: memref<8x16xf32, #tpu.memory_space<vmem>>, %arg1: memref<8x16xf32, #tpu.memory_space<vmem>>, %arg2: memref<16x16xf32, #tpu.memory_space<vmem>>, %arg3: memref<16x16xf32, #tpu.memory_space<vmem>>, %arg4: memref<1x16xf32, #tpu.memory_space<vmem>>, %arg5: memref<16x16xf32, #tpu.memory_space<vmem>>, %arg6: memref<1x16xf32, #tpu.memory_space<vmem>>, %arg7: memref<16x16xf32, #tpu.memory_space<vmem>>, %arg8: memref<1x16xf32, #tpu.memory_space<vmem>>, %arg9: memref<16x8xf32, #tpu.memory_space<vmem>>, %arg10: memref<1x8xf32, #tpu.memory_space<vmem>>, %arg11: memref<8x8xf32, #tpu.memory_space<vmem>>) attributes {dimension_semantics = [], scalar_prefetch = 0 : i64, scratch_operands = 0 : i64, tpu.core_type = #tpu.core_type<tc>} {
    %c0 = arith.constant 0 : index
    %c0_0 = arith.constant 0 : index
    %0 = vector.load %arg0[%c0, %c0_0] : memref<8x16xf32, #tpu.memory_space<vmem>>, vector<8x16xf32>
    %c0_1 = arith.constant 0 : index
    %c0_2 = arith.constant 0 : index
    %1 = vector.load %arg2[%c0_1, %c0_2] : memref<16x16xf32, #tpu.memory_space<vmem>>, vector<16x16xf32>
    %cst = arith.constant dense<0.000000e+00> : vector<8x16xf32>
    %2 = tpu.matmul %0, %1, %cst {dimension_numbers = #tpu.dot_dimension_numbers<[1], [0], [0], [1], [0, 0, 1, 1], [], []>} : vector<8x16xf32>, vector<16x16xf32>, vector<8x16xf32> -> vector<8x16xf32>
    %c0_3 = arith.constant 0 : index
    %c0_4 = arith.constant 0 : index
    %3 = vector.load %arg1[%c0_3, %c0_4] : memref<8x16xf32, #tpu.memory_space<vmem>>, vector<8x16xf32>
    %c0_5 = arith.constant 0 : index
    %c0_6 = arith.constant 0 : index
    %4 = vector.load %arg3[%c0_5, %c0_6] : memref<16x16xf32, #tpu.memory_space<vmem>>, vector<16x16xf32>
    %cst_7 = arith.constant dense<0.000000e+00> : vector<8x16xf32>
    %5 = tpu.matmul %3, %4, %cst_7 {dimension_numbers = #tpu.dot_dimension_numbers<[1], [0], [0], [1], [0, 0, 1, 1], [], []>} : vector<8x16xf32>, vector<16x16xf32>, vector<8x16xf32> -> vector<8x16xf32>
    %6 = arith.addf %2, %5 : vector<8x16xf32>
    %c0_8 = arith.constant 0 : index
    %c0_9 = arith.constant 0 : index
    %7 = vector.load %arg4[%c0_8, %c0_9] : memref<1x16xf32, #tpu.memory_space<vmem>>, vector<1x16xf32>
    %8 = vector.broadcast %7 : vector<1x16xf32> to vector<8x16xf32>
    %9 = arith.addf %6, %8 : vector<8x16xf32>
    %cst_10 = arith.constant 0.000000e+00 : f32
    %10 = vector.broadcast %cst_10 : f32 to vector<8x16xf32>
    %11 = arith.maximumf %9, %10 : vector<8x16xf32>
    %c0_11 = arith.constant 0 : index
    %c0_12 = arith.constant 0 : index
    %12 = vector.load %arg5[%c0_11, %c0_12] : memref<16x16xf32, #tpu.memory_space<vmem>>, vector<16x16xf32>
    %cst_13 = arith.constant dense<0.000000e+00> : vector<8x16xf32>
    %13 = tpu.matmul %11, %12, %cst_13 {dimension_numbers = #tpu.dot_dimension_numbers<[1], [0], [0], [1], [0, 0, 1, 1], [], []>} : vector<8x16xf32>, vector<16x16xf32>, vector<8x16xf32> -> vector<8x16xf32>
    %c0_14 = arith.constant 0 : index
    %c0_15 = arith.constant 0 : index
    %14 = vector.load %arg6[%c0_14, %c0_15] : memref<1x16xf32, #tpu.memory_space<vmem>>, vector<1x16xf32>
    %15 = vector.broadcast %14 : vector<1x16xf32> to vector<8x16xf32>
    %16 = arith.addf %13, %15 : vector<8x16xf32>
    %cst_16 = arith.constant 0.000000e+00 : f32
    %17 = vector.broadcast %cst_16 : f32 to vector<8x16xf32>
    %18 = arith.maximumf %16, %17 : vector<8x16xf32>
    %c0_17 = arith.constant 0 : index
    %c0_18 = arith.constant 0 : index
    %19 = vector.load %arg7[%c0_17, %c0_18] : memref<16x16xf32, #tpu.memory_space<vmem>>, vector<16x16xf32>
    %cst_19 = arith.constant dense<0.000000e+00> : vector<8x16xf32>
    %20 = tpu.matmul %18, %19, %cst_19 {dimension_numbers = #tpu.dot_dimension_numbers<[1], [0], [0], [1], [0, 0, 1, 1], [], []>} : vector<8x16xf32>, vector<16x16xf32>, vector<8x16xf32> -> vector<8x16xf32>
    %c0_20 = arith.constant 0 : index
    %c0_21 = arith.constant 0 : index
    %21 = vector.load %arg8[%c0_20, %c0_21] : memref<1x16xf32, #tpu.memory_space<vmem>>, vector<1x16xf32>
    %22 = vector.broadcast %21 : vector<1x16xf32> to vector<8x16xf32>
    %23 = arith.addf %20, %22 : vector<8x16xf32>
    %cst_22 = arith.constant 0.000000e+00 : f32
    %24 = vector.broadcast %cst_22 : f32 to vector<8x16xf32>
    %25 = arith.maximumf %23, %24 : vector<8x16xf32>
    %c0_23 = arith.constant 0 : index
    %c0_24 = arith.constant 0 : index
    %26 = vector.load %arg9[%c0_23, %c0_24] : memref<16x8xf32, #tpu.memory_space<vmem>>, vector<16x8xf32>
    %cst_25 = arith.constant dense<0.000000e+00> : vector<8x8xf32>
    %27 = tpu.matmul %25, %26, %cst_25 {dimension_numbers = #tpu.dot_dimension_numbers<[1], [0], [0], [1], [0, 0, 1, 1], [], []>} : vector<8x16xf32>, vector<16x8xf32>, vector<8x8xf32> -> vector<8x8xf32>
    %c0_26 = arith.constant 0 : index
    %c0_27 = arith.constant 0 : index
    %28 = vector.load %arg10[%c0_26, %c0_27] : memref<1x8xf32, #tpu.memory_space<vmem>>, vector<1x8xf32>
    %29 = vector.broadcast %28 : vector<1x8xf32> to vector<8x8xf32>
    %30 = arith.addf %27, %29 : vector<8x8xf32>
    %31 = math.tanh %30 : vector<8x8xf32>
    %c0_28 = arith.constant 0 : index
    %c0_29 = arith.constant 0 : index
    %32 = vector.load %arg11[%c0_28, %c0_29] : memref<8x8xf32, #tpu.memory_space<vmem>>, vector<8x8xf32>
    tpu.vector_store %arg11[%c0_28, %c0_29], %31 {strides = array<i32>} : memref<8x8xf32, #tpu.memory_space<vmem>>, vector<8x8xf32>,
    return
  }
}

</mosaic_0001>

<llo_original>
// kernel: neg.1
$region0: #{neg.1}
  #allocation0 [shape = 's32[1]{0}', space=sflag, size = 0x4, scoped, tag = 'scoped memory for neg.1']
  %s0 = inlined_call_operand.vmem [shape: f32[2,4,4], index: 0, kind: input, shape index: {}]
  %s1 = inlined_call_operand.vmem [shape: f32[2,4,4], index: 1, kind: output, shape index: {}]
  %v2 = vld [vmem:[%s0] sm:$0xf]
  %3 = xla_tuple %v2
  %4 = xla_tuple %3
  %v5 = vxor.u32 %v2, 2147483648
  %6 = xla_tuple %v5
  %7 = vst [vmem:[%s1] sm:$0xf] %v5
  %s8 = scalar_lea.vmem %s0, 4
  %v9 = vld [vmem:[%s8] sm:$0xf]
  %10 = xla_tuple %v9
  %11 = xla_tuple %10
  %v12 = vxor.u32 %v9, 2147483648
  %13 = xla_tuple %v12
  %s14 = scalar_lea.vmem %s1, 4
  %15 = vst [vmem:[%s14] sm:$0xf] %v12

// kernel: eq.24
$region0: #{eq.24}
  %s0 = inlined_call_operand.vmem [shape: s32[2,4,2], index: 0, kind: input, shape index: {}]
  %s1 = inlined_call_operand.vmem [shape: s32[2,8], index: 1, kind: output, shape index: {}]
  $region1: #{eq.24} parent=0
    #allocation0 [shape = 'u8[4096]{0}', space=vmem, size = 0x1000, scoped, tag = 'scoped mem for output reshape']
    #allocation1 [shape = 'u8[8192]{0}', space=vmem, size = 0x2000, scoped, tag = 'scoped mem for input reshape']
    %s3 = ssub.s32 16, 1
    %s4 = scalar_lea.vmem %s0, 4
    %v5 = vld [vmem:[%s4] sm:%s3]
    %s6 = scalar_lea.vmem [#allocation1], 8
    %7 = vst [vmem:[%s6] sm:%s3] %v5
    %v8 = vld [vmem:[%s0] sm:%s3]
    %9 = vst [vmem:[#allocation1] sm:%s3] %v8
    %s10 = smov 3
    %v11 = vld [vmem:[#allocation1] ss:$8 sm:%s10]
    %vm12 = vcmask 15360
    %13 = vst.msk [vmem:[#allocation0] sm:$0x3] %vm12, %v11
    %s14 = scalar_lea.vmem [#allocation1], 3
    %s15 = smov 3
    %v16 = vld [vmem:[%s14] ss:$8 sm:%s15]
    %17 = vrot.lane.b32.xlu0 %v16, 6
    %v18 = vpop.permute.xlu0 %17
    %vm19 = vcmask 64560
    %20 = vst.msk [vmem:[#allocation0] sm:$0x3] %vm19, %v18
    %s21 = scalar_lea.vmem [#allocation1], 2
    %s22 = smov 3
    %v23 = vld [vmem:[%s21] ss:$8 sm:%s22]
    %24 = vrot.lane.b32.xlu0 %v23, 4
    %v25 = vpop.permute.xlu0 %24
    %vm26 = vcmask 48160
    %27 = vst.msk [vmem:[#allocation0] sm:$0x3] %vm26, %v25
    %s28 = scalar_lea.vmem [#allocation1], 1
    %s29 = smov 3
    %v30 = vld [vmem:[%s28] ss:$8 sm:%s29]
    %31 = vrot.lane.b32.xlu0 %v30, 2
    %v32 = vpop.permute.xlu0 %31
    %vm33 = vcmask 31760
    %34 = vst.msk [vmem:[#allocation0] sm:$0x3] %vm33, %v32
    %s36 = ssub.s32 4, 1
    %v37 = vld [vmem:[#allocation0] sm:%s36]
    %s39 = ssub.s32 4, 1
    %40 = vst [vmem:[%s1] sm:%s39] %v37

// kernel: atoc_actor_forward.3
$region0: #{atoc_actor_forward.3}
  #allocation0 [shape = 'u32[]', space=smem, size = 0x4, offset = 0x4, fixed_abs, tag = 'smem constant byte address 0x4 - core index']
  #allocation1 [shape = 'u32[72,128]{1,0:T(1,128)}', space=vmem, size = 0x9000, scoped, tag = 'internal scratch']
  #allocation2 [shape = 'f32[1,1]{1,0:T(1,128)S(1)}', space=vmem, size = 0x200, scoped, tag = 'scoped memory for atoc_actor_forward.3']
  %s0 = inlined_call_operand.vmem [shape: f32[8,32], index: 0, kind: input, shape index: {}]
  %s1 = inlined_call_operand.vmem [shape: f32[32,16], index: 1, kind: input, shape index: {}]
  %s2 = inlined_call_operand.vmem [shape: f32[1,16], index: 2, kind: input, shape index: {}]
  %s3 = inlined_call_operand.vmem [shape: f32[16,16], index: 3, kind: input, shape index: {}]
  %s4 = inlined_call_operand.vmem [shape: f32[1,16], index: 4, kind: input, shape index: {}]
  %s5 = inlined_call_operand.hbm [shape: f32[16,32], index: 5, kind: input, shape index: {}]
  %s6 = inlined_call_operand.hbm [shape: f32[1,32], index: 6, kind: input, shape index: {}]
  %s7 = inlined_call_operand.vmem [shape: f32[32,32], index: 7, kind: input, shape index: {}]
  %s8 = inlined_call_operand.hbm [shape: f32[1,32], index: 8, kind: input, shape index: {}]
  %s9 = inlined_call_operand.hbm [shape: f32[1,32], index: 9, kind: input, shape index: {}]
  %s10 = inlined_call_operand.<no memory space> [shape: f32[1,1], index: 10, kind: input, shape index: {}]
  %s11 = inlined_call_operand.vmem [shape: f32[8,16], index: 11, kind: output, shape index: {0}]
  %s12 = inlined_call_operand.vmem [shape: f32[8,1], index: 12, kind: output, shape index: {1}]
  %s13 = inlined_call_operand.vmem [shape: f32[2,4,4], index: 13, kind: output, shape index: {2}]
  %14 = xla_tuple %s11, %s12, %s13
  %s15 = sld [smem:[#allocation0]]
  $region86: #{atoc_actor_forward.3} parent=0
    _
  %s17 = ssub.s32 1, %s15
  %s18 = scalar_select 0, %s17, %s15
  %v19 = vstv %s10
  %20 = vst [vmem:[#allocation2] sm:$0x1] %v19
  $region1: #{atoc_actor_forward.3} parent=0
    #allocation3 [shape = 'u8[8192]{0}', space=vmem, size = 0x2000, scoped, tag = 'input window, operand 5, single buffered']
    #allocation4 [shape = 's32[1]{0}', space=sflag, size = 0x4, scoped, tag = 'scoped memory for atoc_actor_forward.3']
    #allocation5 [shape = 'u8[512]{0}', space=vmem, size = 0x400, scoped, tag = 'input window, operand 6, single buffered']
    #allocation6 [shape = 's32[1]{0}', space=sflag, size = 0x4, scoped, tag = 'scoped memory for atoc_actor_forward.3']
    #allocation7 [shape = 'u8[512]{0}', space=vmem, size = 0x400, scoped, tag = 'input window, operand 8, single buffered']
    #allocation8 [shape = 'u8[512]{0}', space=vmem, size = 0x400, scoped, tag = 'input window, operand 9, single buffered']
    #allocation9 [shape = 's32[1]{0}', space=sflag, size = 0x4, scoped, tag = 'scoped memory for atoc_actor_forward.3']
    %21 = vsyncpa [#allocation4], 0
    %22 = vsyncpa [#allocation6], 0
    %23 = vsyncpa [#allocation9], 0
    // Predicated region
    $region2: #{atoc_actor_forward.3} parent=1 // pred_check
      _
    $region3: #{atoc_actor_forward.3} parent=1 // pred_check_branch
      %25 = sbr.rel (0) target = $region5
    $region4: #{atoc_actor_forward.3} parent=1 // pred_region
      _
    $region5: #{atoc_actor_forward.3} parent=1 // pred_fallthru
      _
    // Predicated region
    $region6: #{atoc_actor_forward.3} parent=1 // pred_check
      _
    $region7: #{atoc_actor_forward.3} parent=1 // pred_check_branch
      %27 = sbr.rel (0) target = $region9
    $region8: #{atoc_actor_forward.3} parent=1 // pred_region
      _
    $region9: #{atoc_actor_forward.3} parent=1 // pred_fallthru
      _
    // Predicated region
    $region10: #{atoc_actor_forward.3} parent=1 // pred_check
      _
    $region11: #{atoc_actor_forward.3} parent=1 // pred_check_branch
      %29 = sbr.rel (0) target = $region13
    $region12: #{atoc_actor_forward.3} parent=1 // pred_region
      _
    $region13: #{atoc_actor_forward.3} parent=1 // pred_fallthru
      _
    // Predicated region
    $region14: #{atoc_actor_forward.3} parent=1 // pred_check
      _
    $region15: #{atoc_actor_forward.3} parent=1 // pred_check_branch
      %31 = sbr.rel (0) target = $region17
    $region16: #{atoc_actor_forward.3} parent=1 // pred_region
      _
    $region17: #{atoc_actor_forward.3} parent=1 // pred_fallthru
      _
    // Predicated region
    $region18: #{atoc_actor_forward.3} parent=1 // pred_check
      _
    $region19: #{atoc_actor_forward.3} parent=1 // pred_check_branch
      %33 = sbr.rel (0) target = $region21
    $region20: #{atoc_actor_forward.3} parent=1 // pred_region
      _
    $region21: #{atoc_actor_forward.3} parent=1 // pred_fallthru
      _
    // Predicated region
    $region22: #{atoc_actor_forward.3} parent=1 // pred_check
      _
    $region23: #{atoc_actor_forward.3} parent=1 // pred_check_branch
      %35 = sbr.rel (0) target = $region25
    $region24: #{atoc_actor_forward.3} parent=1 // pred_region
      %37 = vsyncadd [#allocation4], 0
      %s38 = sshll.u32 %s5, 4
      %s39 = int_to_ptr.hbm [resolvable:$true] %s38
      %s40 = sshll.u32 [#allocation3], 4
      %s41 = int_to_ptr.vmem [resolvable:$true] %s40
      %46 = dma.hbm_to_vmem [thread:$0]  %s39, 256, %s41, [#allocation4], 128, 128, 8
    $region25: #{atoc_actor_forward.3} parent=1 // pred_fallthru
      _
    // Predicated region
    $region26: #{atoc_actor_forward.3} parent=1 // pred_check
      _
    $region27: #{atoc_actor_forward.3} parent=1 // pred_check_branch
      %48 = sbr.rel (0) target = $region29
    $region28: #{atoc_actor_forward.3} parent=1 // pred_region
      %50 = vsyncadd [#allocation6], 0
      %s52 = sshll.u32 %s6, 4
      %s53 = int_to_ptr.hbm [resolvable:$true] %s52
      %s54 = sshll.u32 [#allocation5], 4
      %s55 = int_to_ptr.vmem [resolvable:$true] %s54
      %57 = dma.hbm_to_vmem [thread:$0]  %s53, 16, %s55, [#allocation6]
    $region29: #{atoc_actor_forward.3} parent=1 // pred_fallthru
      _
    // Predicated region
    $region30: #{atoc_actor_forward.3} parent=1 // pred_check
      _
    $region31: #{atoc_actor_forward.3} parent=1 // pred_check_branch
      %59 = sbr.rel (0) target = $region33
    $region32: #{atoc_actor_forward.3} parent=1 // pred_region
      _
    $region33: #{atoc_actor_forward.3} parent=1 // pred_fallthru
      _
    // Predicated region
    $region34: #{atoc_actor_forward.3} parent=1 // pred_check
      _
    $region35: #{atoc_actor_forward.3} parent=1 // pred_check_branch
      %61 = sbr.rel (0) target = $region37
    $region36: #{atoc_actor_forward.3} parent=1 // pred_region
      %63 = vsyncadd [#allocation6], 0
      %s65 = sshll.u32 %s8, 4
      %s66 = int_to_ptr.hbm [resolvable:$true] %s65
      %s67 = sshll.u32 [#allocation7], 4
      %s68 = int_to_ptr.vmem [resolvable:$true] %s67
      %70 = dma.hbm_to_vmem [thread:$0]  %s66, 16, %s68, [#allocation6]
    $region37: #{atoc_actor_forward.3} parent=1 // pred_fallthru
      _
    // Predicated region
    $region38: #{atoc_actor_forward.3} parent=1 // pred_check
      _
    $region39: #{atoc_actor_forward.3} parent=1 // pred_check_branch
      %72 = sbr.rel (0) target = $region41
    $region40: #{atoc_actor_forward.3} parent=1 // pred_region
      %74 = vsyncadd [#allocation9], 0
      %s76 = sshll.u32 %s9, 4
      %s77 = int_to_ptr.hbm [resolvable:$true] %s76
      %s78 = sshll.u32 [#allocation8], 4
      %s79 = int_to_ptr.vmem [resolvable:$true] %s78
      %81 = dma.hbm_to_vmem [thread:$0]  %s77, 16, %s79, [#allocation9]
    $region41: #{atoc_actor_forward.3} parent=1 // pred_fallthru
      _
    // Predicated region
    $region42: #{atoc_actor_forward.3} parent=1 // pred_check
      _
    $region43: #{atoc_actor_forward.3} parent=1 // pred_check_branch
      %83 = sbr.rel (0) target = $region45
    $region44: #{atoc_actor_forward.3} parent=1 // pred_region
      _
    $region45: #{atoc_actor_forward.3} parent=1 // pred_fallthru
      _
    // Predicated region
    $region46: #{atoc_actor_forward.3} parent=1 // pred_check
      _
    $region47: #{atoc_actor_forward.3} parent=1 // pred_check_branch
      %85 = sbr.rel (0) target = $region49
    $region48: #{atoc_actor_forward.3} parent=1 // pred_region
      %87 = dma.done [#allocation4], 256
    $region49: #{atoc_actor_forward.3} parent=1 // pred_fallthru
      _
    // Predicated region
    $region50: #{atoc_actor_forward.3} parent=1 // pred_check
      _
    $region51: #{atoc_actor_forward.3} parent=1 // pred_check_branch
      %89 = sbr.rel (0) target = $region53
    $region52: #{atoc_actor_forward.3} parent=1 // pred_region
      %91 = dma.done [#allocation6], 16
    $region53: #{atoc_actor_forward.3} parent=1 // pred_fallthru
      _
    // Predicated region
    $region54: #{atoc_actor_forward.3} parent=1 // pred_check
      _
    $region55: #{atoc_actor_forward.3} parent=1 // pred_check_branch
      %93 = sbr.rel (0) target = $region57
    $region56: #{atoc_actor_forward.3} parent=1 // pred_region
      %95 = dma.done [#allocation6], 16
    $region57: #{atoc_actor_forward.3} parent=1 // pred_fallthru
      _
    // Predicated region
    $region58: #{atoc_actor_forward.3} parent=1 // pred_check
      _
    $region59: #{atoc_actor_forward.3} parent=1 // pred_check_branch
      %97 = sbr.rel (0) target = $region61
    $region60: #{atoc_actor_forward.3} parent=1 // pred_region
      %99 = dma.done [#allocation9], 16
    $region61: #{atoc_actor_forward.3} parent=1 // pred_fallthru
      _
    %v100 = vld [vmem:[%s0] sm:$0xff]
    %v101 = vld [vmem:[%s1] sm:$0xff]
    %v102 = vld [vmem:[%s1 + $0x8] sm:$0xff]
    %v103 = vld [vmem:[%s1 + $0x10] sm:$0xff]
    %v104 = vld [vmem:[%s1 + $0x18] sm:$0xff]
    %v105 = vld [vmem:[%s2] sm:$0x1]
    %v107 = vperm.slane %v105, 0
    %vm109 = vcmask 261120
    %v111 = vsel %vm109, %v100, 0
    %113 = vmatpush.msra.mxu0 0.0
    %114 = vmatpush.msra.mxu0 0.0
    %115 = vmatpush.msra.mxu0 0.0
    %116 = vmatpush.msra.mxu0 0.0
    %117 = vmatpush.msra.mxu0 0.0
    %118 = vmatpush.msra.mxu0 0.0
    %119 = vmatpush.msra.mxu0 0.0
    %120 = vmatpush.msra.mxu0 0.0
    %121 = vmatpush.msra.mxu0 0.0
    %122 = vmatpush.msra.mxu0 0.0
    %123 = vmatpush.msra.mxu0 0.0
    %124 = vmatpush.msra.mxu0 0.0
    %125 = vmatpush.msra.mxu0 %v104
    %126 = vmatpush.msra.mxu0 %v103
    %127 = vmatpush.msra.mxu0 %v102
    %128 = vmatpush.msra.mxu0 %v101
    %129 = vmatmul.f32.gmra.mxu0 %v111
    %v130 = vpop.f32.mrf.mxu0
    %v131 = vadd.f32 %v107, %v130
    %132 = vdwg.mxu0
    %v133 = vmax.f32 %v131, 0.0
    %v134 = vld [vmem:[%s3] sm:$0xff]
    %v135 = vld [vmem:[%s3 + $0x8] sm:$0xff]
    %v136 = vld [vmem:[%s4] sm:$0x1]
    %v138 = vperm.slane %v136, 0
    %vm140 = vcmask 130048
    %v142 = vsel %vm140, %v133, 0
    %144 = vmatpush.msra.mxu0 0.0
    %145 = vmatpush.msra.mxu0 0.0
    %146 = vmatpush.msra.mxu0 0.0
    %147 = vmatpush.msra.mxu0 0.0
    %148 = vmatpush.msra.mxu0 0.0
    %149 = vmatpush.msra.mxu0 0.0
    %150 = vmatpush.msra.mxu0 0.0
    %151 = vmatpush.msra.mxu0 0.0
    %152 = vmatpush.msra.mxu0 0.0
    %153 = vmatpush.msra.mxu0 0.0
    %154 = vmatpush.msra.mxu0 0.0
    %155 = vmatpush.msra.mxu0 0.0
    %156 = vmatpush.msra.mxu0 0.0
    %157 = vmatpush.msra.mxu0 0.0
    %158 = vmatpush.msra.mxu0 %v135
    %159 = vmatpush.msra.mxu0 %v134
    %160 = vmatmul.f32.gmra.mxu0 %v142
    %v161 = vpop.f32.mrf.mxu0
    %v162 = vadd.f32 %v138, %v161
    %163 = vdwg.mxu0
    %v164 = vmax.f32 %v162, 0.0
    %165 = vst.msk [vmem:[%s11] sm:$0xff] %vm140, %v164
    %v166 = vld [vmem:[#allocation3] sm:$0xff]
    %v167 = vld [vmem:[#allocation3 + $0x8] sm:$0xff]
    %v168 = vld [vmem:[#allocation5] sm:$0x1]
    %v170 = vperm.slane %v168, 0
    %v173 = vsel %vm140, %v164, 0
    %175 = vmatpush.msra.mxu0 0.0
    %176 = vmatpush.msra.mxu0 0.0
    %177 = vmatpush.msra.mxu0 0.0
    %178 = vmatpush.msra.mxu0 0.0
    %179 = vmatpush.msra.mxu0 0.0
    %180 = vmatpush.msra.mxu0 0.0
    %181 = vmatpush.msra.mxu0 0.0
    %182 = vmatpush.msra.mxu0 0.0
    %183 = vmatpush.msra.mxu0 0.0
    %184 = vmatpush.msra.mxu0 0.0
    %185 = vmatpush.msra.mxu0 0.0
    %186 = vmatpush.msra.mxu0 0.0
    %187 = vmatpush.msra.mxu0 0.0
    %188 = vmatpush.msra.mxu0 0.0
    %189 = vmatpush.msra.mxu0 %v167
    %190 = vmatpush.msra.mxu0 %v166
    %191 = vmatmul.f32.gmra.mxu0 %v173
    %v192 = vpop.f32.mrf.mxu0
    %v193 = vadd.f32 %v170, %v192
    %194 = vdwg.mxu0
    %v195 = vmax.f32 %v193, 0.0
    %v196 = vld [vmem:[%s7] sm:$0xff]
    %v197 = vld [vmem:[%s7 + $0x8] sm:$0xff]
    %v198 = vld [vmem:[%s7 + $0x10] sm:$0xff]
    %v199 = vld [vmem:[%s7 + $0x18] sm:$0xff]
    %v200 = vld [vmem:[#allocation7] sm:$0x1]
    %v202 = vperm.slane %v200, 0
    %v205 = vsel %vm109, %v195, 0
    %207 = vmatpush.msra.mxu0 0.0
    %208 = vmatpush.msra.mxu0 0.0
    %209 = vmatpush.msra.mxu0 0.0
    %210 = vmatpush.msra.mxu0 0.0
    %211 = vmatpush.msra.mxu0 0.0
    %212 = vmatpush.msra.mxu0 0.0
    %213 = vmatpush.msra.mxu0 0.0
    %214 = vmatpush.msra.mxu0 0.0
    %215 = vmatpush.msra.mxu0 0.0
    %216 = vmatpush.msra.mxu0 0.0
    %217 = vmatpush.msra.mxu0 0.0
    %218 = vmatpush.msra.mxu0 0.0
    %219 = vmatpush.msra.mxu0 %v199
    %220 = vmatpush.msra.mxu0 %v198
    %221 = vmatpush.msra.mxu0 %v197
    %222 = vmatpush.msra.mxu0 %v196
    %223 = vmatmul.f32.gmra.mxu0 %v205
    %v224 = vpop.f32.mrf.mxu0
    %v225 = vadd.f32 %v202, %v224
    %226 = vdwg.mxu0
    %v227 = vmax.f32 %v225, 0.0
    %v228 = vld [vmem:[#allocation8] sm:$0x1]
    %v230 = vperm.slane %v228, 0
    %v232 = vmul.f32 %v227, %v230
    %v233 = vsel %vm109, %v232, 0.0
    %234 = vadd.xlane.f32.xlu0 %v233
    %v235 = vpop.xlane.xlu0 %234
    %v236 = vld [vmem:[#allocation2] sm:$0x1]
    %v238 = vperm.slane %v236, 0
    %v240 = vadd.f32 %v235, %v238
    %v241 = vxor.u32 %v240, 2147483648
    %v242 = vmul.f32 %v241, 1.442695
    %v243 = vpow.pop %v242
    %v244 = vadd.f32 %v243, 1.0
    %v245 = vrcp.pop %v244
    %v246 = vmul.f32 %v244, %v245
    %v247 = vsub.f32 1.0, %v246
    %v248 = vmul.f32 %v245, %v247
    %v249 = vadd.f32 %v245, %v248
    %vm250 = vweird.f32 %v244
    %vm251 = vweird.f32 %v245
    %vm252 = vmor %vm250, %vm251
    %v253 = vsel %vm252, %v245, %v249
    %v254 = vand.u32 2147483647, %v244
    %vm255 = vcmp.eq.f32.partialorder %v254, 8.507059e+37
    %v256 = vand.u32 %v244, 2147483648
    %v257 = vor.u32 1.1754944e-38, %v256
    %v258 = vsel %vm255, %v257, %v253
    %v259 = vmul.f32 1.0, %v258
    %vm260 = vcmask 7168
    %261 = vst.msk [vmem:[%s12] sm:$0xff] %vm260, %v259
    %262 = vmatpush.xpose.msra.mxu0 0.0
    %263 = vmatpush.xpose.msra.mxu0 0.0
    %264 = vmatpush.xpose.msra.mxu0 0.0
    %265 = vmatpush.xpose.msra.mxu0 0.0
    %266 = vmatpush.xpose.msra.mxu0 0.0
    %267 = vmatpush.xpose.msra.mxu0 0.0
    %268 = vmatpush.xpose.msra.mxu0 0.0
    %269 = vmatpush.xpose.msra.mxu0 0.0
    %270 = vmatpush.xpose.msra.mxu0 0.0
    %271 = vmatpush.xpose.msra.mxu0 0.0
    %272 = vmatpush.xpose.msra.mxu0 0.0
    %273 = vmatpush.xpose.msra.mxu0 0.0
    %274 = vmatpush.xpose.msra.mxu0 0.0
    %275 = vmatpush.xpose.msra.mxu0 0.0
    %276 = vmatpush.xpose.msra.mxu0 0.0
    %277 = vmatpush.xpose.msra.mxu0 %v173
    %278 = vmatmul.f32.gmra.mxu0 %v173
    %v279 = vpop.f32.mrf.mxu0
    %v280 = vadd.f32 0.0, %v279
    %281 = vdwg.mxu0
    %v282 = vmul.f32 %v164, %v164
    %v283 = vsel %vm140, %v282, 0.0
    %284 = vadd.xlane.f32.xlu0 %v283
    %v285 = vpop.xlane.xlu0 %284
    %v287 = vsel %vm140, 1.0, 0
    %v290 = vsel %vm140, %v282, 0
    %292 = vmatpush.xpose.msra.mxu0 0.0
    %293 = vmatpush.xpose.msra.mxu0 0.0
    %294 = vmatpush.xpose.msra.mxu0 0.0
    %295 = vmatpush.xpose.msra.mxu0 0.0
    %296 = vmatpush.xpose.msra.mxu0 0.0
    %297 = vmatpush.xpose.msra.mxu0 0.0
    %298 = vmatpush.xpose.msra.mxu0 0.0
    %299 = vmatpush.xpose.msra.mxu0 0.0
    %300 = vmatpush.xpose.msra.mxu0 0.0
    %301 = vmatpush.xpose.msra.mxu0 0.0
    %302 = vmatpush.xpose.msra.mxu0 0.0
    %303 = vmatpush.xpose.msra.mxu0 0.0
    %304 = vmatpush.xpose.msra.mxu0 0.0
    %305 = vmatpush.xpose.msra.mxu0 0.0
    %306 = vmatpush.xpose.msra.mxu0 0.0
    %307 = vmatpush.xpose.msra.mxu0 %v290
    %308 = vmatmul.f32.gmra.mxu0 %v287
    %v309 = vpop.f32.mrf.mxu0
    %v310 = vadd.f32 0.0, %v309
    %311 = vdwg.mxu0
    %v312 = vmul.f32 %v280, 2.0
    %v313 = vperm.slane %v310, 0
    %v314 = vsub.f32 %v313, %v312
    %v315 = vadd.f32 %v314, %v285
    %vm316 = vcmask 27648
    %317 = vst.msk [vmem:[%s13] sm:$0xf] %vm316, %v315
    %319 = vrot.lane.b32.xlu0 %v315, 124
    %v320 = vpop.permute.xlu0 %319
    %s322 = scalar_lea.vmem %s13, 4
    %vm323 = vcmask 31748
    %324 = vst.msk [vmem:[%s322 - $0x4] sm:$0xf0] %vm323, %v320
    // Predicated region
    $region62: #{atoc_actor_forward.3} parent=1 // pred_check
      _
    $region63: #{atoc_actor_forward.3} parent=1 // pred_check_branch
      %326 = sbr.rel (0) target = $region65
    $region64: #{atoc_actor_forward.3} parent=1 // pred_region
      _
    $region65: #{atoc_actor_forward.3} parent=1 // pred_fallthru
      _
    // Predicated region
    $region66: #{atoc_actor_forward.3} parent=1 // pred_check
      _
    $region67: #{atoc_actor_forward.3} parent=1 // pred_check_branch
      %328 = sbr.rel (0) target = $region69
    $region68: #{atoc_actor_forward.3} parent=1 // pred_region
      _
    $region69: #{atoc_actor_forward.3} parent=1 // pred_fallthru
      _
    // Predicated region
    $region70: #{atoc_actor_forward.3} parent=1 // pred_check
      _
    $region71: #{atoc_actor_forward.3} parent=1 // pred_check_branch
      %330 = sbr.rel (0) target = $region73
    $region72: #{atoc_actor_forward.3} parent=1 // pred_region
      _
    $region73: #{atoc_actor_forward.3} parent=1 // pred_fallthru
      _
    // Predicated region
    $region74: #{atoc_actor_forward.3} parent=1 // pred_check
      _
    $region75: #{atoc_actor_forward.3} parent=1 // pred_check_branch
      %332 = sbr.rel (0) target = $region77
    $region76: #{atoc_actor_forward.3} parent=1 // pred_region
      _
    $region77: #{atoc_actor_forward.3} parent=1 // pred_fallthru
      _
    // Predicated region
    $region78: #{atoc_actor_forward.3} parent=1 // pred_check
      _
    $region79: #{atoc_actor_forward.3} parent=1 // pred_check_branch
      %334 = sbr.rel (0) target = $region81
    $region80: #{atoc_actor_forward.3} parent=1 // pred_region
      _
    $region81: #{atoc_actor_forward.3} parent=1 // pred_fallthru
      _
    // Predicated region
    $region82: #{atoc_actor_forward.3} parent=1 // pred_check
      _
    $region83: #{atoc_actor_forward.3} parent=1 // pred_check_branch
      %336 = sbr.rel (0) target = $region85
    $region84: #{atoc_actor_forward.3} parent=1 // pred_region
      _
    $region85: #{atoc_actor_forward.3} parent=1 // pred_fallthru
      _
    %337 = vsyncpa [#allocation4], 1
    %338 = vsyncpa [#allocation6], 1
    %339 = vsyncpa [#allocation9], 1

// kernel: atoc_actor_forward.4
$region0: #{atoc_actor_forward.4}
  #allocation0 [shape = 'u32[]', space=smem, size = 0x4, offset = 0x4, fixed_abs, tag = 'smem constant byte address 0x4 - core index']
  #allocation1 [shape = 'u32[72,128]{1,0:T(1,128)}', space=vmem, size = 0x9000, scoped, tag = 'internal scratch']
  %s0 = inlined_call_operand.vmem [shape: f32[16,16], index: 0, kind: input, shape index: {}]
  %s1 = inlined_call_operand.vmem [shape: f32[16,64], index: 1, kind: input, shape index: {}]
  %s2 = inlined_call_operand.vmem [shape: f32[1,64], index: 2, kind: input, shape index: {}]
  %s3 = inlined_call_operand.vmem [shape: f32[8,32], index: 3, kind: input, shape index: {}]
  %s4 = inlined_call_operand.vmem [shape: f32[8,32], index: 4, kind: input, shape index: {}]
  %s5 = inlined_call_operand.vmem [shape: f32[2,8,16], index: 5, kind: output, shape index: {}]
  %s6 = sld [smem:[#allocation0]]
  $region30: #{atoc_actor_forward.4} parent=0
    _
  %s8 = ssub.s32 1, %s6
  %s9 = scalar_select 0, %s8, %s6
  // Predicated region
  $region2: #{atoc_actor_forward.4} parent=0 // pred_check
    _
  $region3: #{atoc_actor_forward.4} parent=0 // pred_check_branch
    %11 = sbr.rel (0) target = $region5
  $region4: #{atoc_actor_forward.4} parent=0 // pred_region
    _
  $region5: #{atoc_actor_forward.4} parent=0 // pred_fallthru
    _
  // Predicated region
  $region6: #{atoc_actor_forward.4} parent=0 // pred_check
    _
  $region7: #{atoc_actor_forward.4} parent=0 // pred_check_branch
    %13 = sbr.rel (0) target = $region9
  $region8: #{atoc_actor_forward.4} parent=0 // pred_region
    _
  $region9: #{atoc_actor_forward.4} parent=0 // pred_fallthru
    _
  // Predicated region
  $region10: #{atoc_actor_forward.4} parent=0 // pred_check
    _
  $region11: #{atoc_actor_forward.4} parent=0 // pred_check_branch
    %15 = sbr.rel (0) target = $region13
  $region12: #{atoc_actor_forward.4} parent=0 // pred_region
    _
  $region13: #{atoc_actor_forward.4} parent=0 // pred_fallthru
    _
  // Predicated region
  $region14: #{atoc_actor_forward.4} parent=0 // pred_check
    _
  $region15: #{atoc_actor_forward.4} parent=0 // pred_check_branch
    %17 = sbr.rel (0) target = $region17
  $region16: #{atoc_actor_forward.4} parent=0 // pred_region
    _
  $region17: #{atoc_actor_forward.4} parent=0 // pred_fallthru
    _
  // Predicated region
  $region18: #{atoc_actor_forward.4} parent=0 // pred_check
    _
  $region19: #{atoc_actor_forward.4} parent=0 // pred_check_branch
    %19 = sbr.rel (0) target = $region21
  $region20: #{atoc_actor_forward.4} parent=0 // pred_region
    _
  $region21: #{atoc_actor_forward.4} parent=0 // pred_fallthru
    _
  %v20 = vld [vmem:[%s0] sm:$0xff]
  %v21 = vld [vmem:[%s0 + $0x8] sm:$0xff]
  %v22 = vld [vmem:[%s1] sm:$0xff]
  %v23 = vld [vmem:[%s1 + $0x8] sm:$0xff]
  %v24 = vld [vmem:[%s2] sm:$0x1]
  %v26 = vperm.slane %v24, 0
  %vm28 = vcmask 130048
  %v30 = vsel %vm28, %v20, 0
  %v33 = vsel %vm28, %v21, 0
  %35 = vmatpush.msra.mxu0 0.0
  %36 = vmatpush.msra.mxu0 0.0
  %37 = vmatpush.msra.mxu0 0.0
  %38 = vmatpush.msra.mxu0 0.0
  %39 = vmatpush.msra.mxu0 0.0
  %40 = vmatpush.msra.mxu0 0.0
  %41 = vmatpush.msra.mxu0 0.0
  %42 = vmatpush.msra.mxu0 0.0
  %43 = vmatpush.msra.mxu0 0.0
  %44 = vmatpush.msra.mxu0 0.0
  %45 = vmatpush.msra.mxu0 0.0
  %46 = vmatpush.msra.mxu0 0.0
  %47 = vmatpush.msra.mxu0 0.0
  %48 = vmatpush.msra.mxu0 0.0
  %49 = vmatpush.msra.mxu0 %v23
  %50 = vmatpush.msra.mxu0 %v22
  %51 = vmatmul.f32.gmra.mxu0 %v30
  %v52 = vpop.f32.mrf.mxu0
  %v53 = vadd.f32 %v26, %v52
  %54 = vmatmul.f32.gmra.mxu0 %v33
  %v55 = vpop.f32.mrf.mxu0
  %v56 = vadd.f32 %v26, %v55
  %57 = vdwg.mxu0
  %v58 = vld [vmem:[%s3] sm:$0xff]
  %v59 = vld [vmem:[%s4] sm:$0xff]
  %vm60 = vcmask 64512
  %v62 = vsel %vm60, 0.0, 0
  %64 = vmatpush.msra.mxu0 0.0
  %65 = vmatpush.msra.mxu0 0.0
  %66 = vmatpush.msra.mxu0 0.0
  %67 = vmatpush.msra.mxu0 0.0
  %68 = vmatpush.msra.mxu0 0.0
  %69 = vmatpush.msra.mxu0 0.0
  %70 = vmatpush.msra.mxu0 0.0
  %71 = vmatpush.msra.mxu0 0.0
  %72 = vmatpush.msra.mxu0 0.0
  %73 = vmatpush.msra.mxu0 0.0
  %74 = vmatpush.msra.mxu0 0.0
  %75 = vmatpush.msra.mxu0 0.0
  %76 = vmatpush.msra.mxu0 0.0
  %77 = vmatpush.msra.mxu0 0.0
  %78 = vmatpush.msra.mxu0 0.0
  %79 = vmatpush.msra.mxu0 %v58
  %80 = vmatmul.f32.gmra.mxu0 %v62
  %v81 = vpop.f32.mrf.mxu0
  %v82 = vadd.f32 0.0, %v81
  %83 = vdwg.mxu0
  %v84 = vadd.f32 %v53, %v82
  %v85 = vxor.u32 %v84, 2147483648
  %v86 = vmul.f32 %v85, 1.442695
  %v87 = vpow.pop %v86
  %v88 = vadd.f32 %v87, 1.0
  %v89 = vrcp.pop %v88
  %v90 = vmul.f32 %v88, %v89
  %v91 = vsub.f32 1.0, %v90
  %v92 = vmul.f32 %v89, %v91
  %v93 = vadd.f32 %v89, %v92
  %vm94 = vweird.f32 %v88
  %vm95 = vweird.f32 %v89
  %vm96 = vmor %vm94, %vm95
  %v97 = vsel %vm96, %v89, %v93
  %v98 = vand.u32 2147483647, %v88
  %vm99 = vcmp.eq.f32.partialorder %v98, 8.507059e+37
  %v100 = vand.u32 %v88, 2147483648
  %v101 = vor.u32 1.1754944e-38, %v100
  %v102 = vsel %vm99, %v101, %v97
  %v103 = vmul.f32 1.0, %v102
  %v104 = vtanh.pop %v84
  %v105 = vmul.f32 %v103, 0.0
  %107 = vrot.lane.b32.xlu0 %v104, 104
  %v108 = vpop.permute.xlu0 %107
  %v110 = vmul.f32 %v103, %v108
  %112 = vrot.lane.b32.xlu0 %v110, 8
  %v113 = vpop.permute.xlu0 %112
  %v115 = vadd.f32 %v105, %v113
  %v116 = vtanh.pop %v115
  %118 = vrot.lane.b32.xlu0 %v116, 8
  %v119 = vpop.permute.xlu0 %118
  %v121 = vmul.f32 %v103, %v119
  %122 = vmatpush.msra.mxu0 0.0
  %123 = vmatpush.msra.mxu0 0.0
  %124 = vmatpush.msra.mxu0 0.0
  %125 = vmatpush.msra.mxu0 0.0
  %126 = vmatpush.msra.mxu0 0.0
  %127 = vmatpush.msra.mxu0 0.0
  %128 = vmatpush.msra.mxu0 0.0
  %129 = vmatpush.msra.mxu0 0.0
  %130 = vmatpush.msra.mxu0 0.0
  %131 = vmatpush.msra.mxu0 0.0
  %132 = vmatpush.msra.mxu0 0.0
  %133 = vmatpush.msra.mxu0 0.0
  %134 = vmatpush.msra.mxu0 0.0
  %135 = vmatpush.msra.mxu0 0.0
  %136 = vmatpush.msra.mxu0 0.0
  %137 = vmatpush.msra.mxu0 %v59
  %138 = vmatmul.f32.gmra.mxu0 %v62
  %v139 = vpop.f32.mrf.mxu0
  %v140 = vadd.f32 0.0, %v139
  %141 = vdwg.mxu0
  %143 = vrot.lane.b32.xlu0 %v140, 32
  %v144 = vpop.permute.xlu0 %143
  %v146 = vadd.f32 %v56, %v144
  %v147 = vxor.u32 %v146, 2147483648
  %v148 = vmul.f32 %v147, 1.442695
  %v149 = vpow.pop %v148
  %v150 = vadd.f32 %v149, 1.0
  %v151 = vrcp.pop %v150
  %v152 = vmul.f32 %v150, %v151
  %v153 = vsub.f32 1.0, %v152
  %v154 = vmul.f32 %v151, %v153
  %v155 = vadd.f32 %v151, %v154
  %vm156 = vweird.f32 %v150
  %vm157 = vweird.f32 %v151
  %vm158 = vmor %vm156, %vm157
  %v159 = vsel %vm158, %v151, %v155
  %v160 = vand.u32 2147483647, %v150
  %vm161 = vcmp.eq.f32.partialorder %v160, 8.507059e+37
  %v162 = vand.u32 %v150, 2147483648
  %v163 = vor.u32 1.1754944e-38, %v162
  %v164 = vsel %vm161, %v163, %v159
  %v165 = vmul.f32 1.0, %v164
  %v166 = vtanh.pop %v146
  %v167 = vmul.f32 %v165, 0.0
  %169 = vrot.lane.b32.xlu0 %v166, 104
  %v170 = vpop.permute.xlu0 %169
  %v172 = vmul.f32 %v165, %v170
  %174 = vrot.lane.b32.xlu0 %v172, 8
  %v175 = vpop.permute.xlu0 %174
  %v177 = vadd.f32 %v167, %v175
  %v178 = vtanh.pop %v177
  %180 = vrot.lane.b32.xlu0 %v178, 8
  %v181 = vpop.permute.xlu0 %180
  %v183 = vmul.f32 %v165, %v181
  %185 = vrot.lane.b32.xlu0 %v121, 112
  %v186 = vpop.permute.xlu0 %185
  %188 = vst.msk [vmem:[%s5] sm:$0xff] %vm60, %v186
  %190 = vrot.lane.b32.xlu0 %v183, 88
  %v191 = vpop.permute.xlu0 %190
  %s193 = scalar_lea.vmem %s5, 8
  %vm194 = vcmask 130112
  %195 = vst.msk [vmem:[%s193] sm:$0xff] %vm194, %v191
  %v196 = vsel %vm60, %v186, 0
  %198 = vmatpush.msra.mxu0 0.0
  %199 = vmatpush.msra.mxu0 0.0
  %200 = vmatpush.msra.mxu0 0.0
  %201 = vmatpush.msra.mxu0 0.0
  %202 = vmatpush.msra.mxu0 0.0
  %203 = vmatpush.msra.mxu0 0.0
  %204 = vmatpush.msra.mxu0 0.0
  %205 = vmatpush.msra.mxu0 0.0
  %206 = vmatpush.msra.mxu0 0.0
  %207 = vmatpush.msra.mxu0 0.0
  %208 = vmatpush.msra.mxu0 0.0
  %209 = vmatpush.msra.mxu0 0.0
  %210 = vmatpush.msra.mxu0 0.0
  %211 = vmatpush.msra.mxu0 0.0
  %212 = vmatpush.msra.mxu0 0.0
  %213 = vmatpush.msra.mxu0 %v58
  %214 = vmatmul.f32.gmra.mxu0 %v196
  %v215 = vpop.f32.mrf.mxu0
  %v216 = vadd.f32 0.0, %v215
  %217 = vdwg.mxu0
  %v218 = vadd.f32 %v56, %v216
  %v219 = vxor.u32 %v218, 2147483648
  %v220 = vmul.f32 %v219, 1.442695
  %v221 = vpow.pop %v220
  %v222 = vadd.f32 %v221, 1.0
  %v223 = vrcp.pop %v222
  %v224 = vmul.f32 %v222, %v223
  %v225 = vsub.f32 1.0, %v224
  %v226 = vmul.f32 %v223, %v225
  %v227 = vadd.f32 %v223, %v226
  %vm228 = vweird.f32 %v222
  %vm229 = vweird.f32 %v223
  %vm230 = vmor %vm228, %vm229
  %v231 = vsel %vm230, %v223, %v227
  %v232 = vand.u32 2147483647, %v222
  %vm233 = vcmp.eq.f32.partialorder %v232, 8.507059e+37
  %v234 = vand.u32 %v222, 2147483648
  %v235 = vor.u32 1.1754944e-38, %v234
  %v236 = vsel %vm233, %v235, %v231
  %v237 = vmul.f32 1.0, %v236
  %v238 = vtanh.pop %v218
  %v239 = vmul.f32 %v237, %v115
  %241 = vrot.lane.b32.xlu0 %v238, 104
  %v242 = vpop.permute.xlu0 %241
  %v244 = vmul.f32 %v237, %v242
  %246 = vrot.lane.b32.xlu0 %v244, 8
  %v247 = vpop.permute.xlu0 %246
  %v249 = vadd.f32 %v239, %v247
  %v250 = vtanh.pop %v249
  %252 = vrot.lane.b32.xlu0 %v250, 8
  %v253 = vpop.permute.xlu0 %252
  %v255 = vmul.f32 %v237, %v253
  %256 = vrot.lane.b32.xlu0 %v183, 80
  %v257 = vpop.permute.xlu0 %256
  %v258 = vsel %vm60, %v257, 0
  %260 = vmatpush.msra.mxu0 0.0
  %261 = vmatpush.msra.mxu0 0.0
  %262 = vmatpush.msra.mxu0 0.0
  %263 = vmatpush.msra.mxu0 0.0
  %264 = vmatpush.msra.mxu0 0.0
  %265 = vmatpush.msra.mxu0 0.0
  %266 = vmatpush.msra.mxu0 0.0
  %267 = vmatpush.msra.mxu0 0.0
  %268 = vmatpush.msra.mxu0 0.0
  %269 = vmatpush.msra.mxu0 0.0
  %270 = vmatpush.msra.mxu0 0.0
  %271 = vmatpush.msra.mxu0 0.0
  %272 = vmatpush.msra.mxu0 0.0
  %273 = vmatpush.msra.mxu0 0.0
  %274 = vmatpush.msra.mxu0 0.0
  %275 = vmatpush.msra.mxu0 %v59
  %276 = vmatmul.f32.gmra.mxu0 %v258
  %v277 = vpop.f32.mrf.mxu0
  %v278 = vadd.f32 0.0, %v277
  %279 = vdwg.mxu0
  %281 = vrot.lane.b32.xlu0 %v278, 32
  %v282 = vpop.permute.xlu0 %281
  %v284 = vadd.f32 %v53, %v282
  %v285 = vxor.u32 %v284, 2147483648
  %v286 = vmul.f32 %v285, 1.442695
  %v287 = vpow.pop %v286
  %v288 = vadd.f32 %v287, 1.0
  %v289 = vrcp.pop %v288
  %v290 = vmul.f32 %v288, %v289
  %v291 = vsub.f32 1.0, %v290
  %v292 = vmul.f32 %v289, %v291
  %v293 = vadd.f32 %v289, %v292
  %vm294 = vweird.f32 %v288
  %vm295 = vweird.f32 %v289
  %vm296 = vmor %vm294, %vm295
  %v297 = vsel %vm296, %v289, %v293
  %v298 = vand.u32 2147483647, %v288
  %vm299 = vcmp.eq.f32.partialorder %v298, 8.507059e+37
  %v300 = vand.u32 %v288, 2147483648
  %v301 = vor.u32 1.1754944e-38, %v300
  %v302 = vsel %vm299, %v301, %v297
  %v303 = vmul.f32 1.0, %v302
  %v304 = vtanh.pop %v284
  %v305 = vmul.f32 %v303, %v177
  %307 = vrot.lane.b32.xlu0 %v304, 104
  %v308 = vpop.permute.xlu0 %307
  %v310 = vmul.f32 %v303, %v308
  %312 = vrot.lane.b32.xlu0 %v310, 8
  %v313 = vpop.permute.xlu0 %312
  %v315 = vadd.f32 %v305, %v313
  %v316 = vtanh.pop %v315
  %318 = vrot.lane.b32.xlu0 %v316, 8
  %v319 = vpop.permute.xlu0 %318
  %v321 = vmul.f32 %v303, %v319
  %323 = vrot.lane.b32.xlu0 %v255, 112
  %v324 = vpop.permute.xlu0 %323
  %326 = vst.msk [vmem:[%s193] sm:$0xff] %vm60, %v324
  %328 = vrot.lane.b32.xlu0 %v321, 88
  %v329 = vpop.permute.xlu0 %328
  %331 = vst.msk [vmem:[%s5] sm:$0xff] %vm194, %v329
  // Predicated region
  $region22: #{atoc_actor_forward.4} parent=0 // pred_check
    _
  $region23: #{atoc_actor_forward.4} parent=0 // pred_check_branch
    %333 = sbr.rel (0) target = $region25
  $region24: #{atoc_actor_forward.4} parent=0 // pred_region
    _
  $region25: #{atoc_actor_forward.4} parent=0 // pred_fallthru
    _
  // Predicated region
  $region26: #{atoc_actor_forward.4} parent=0 // pred_check
    _
  $region27: #{atoc_actor_forward.4} parent=0 // pred_check_branch
    %335 = sbr.rel (0) target = $region29
  $region28: #{atoc_actor_forward.4} parent=0 // pred_region
    _
  $region29: #{atoc_actor_forward.4} parent=0 // pred_fallthru
    _

// kernel: atoc_actor_forward.5
$region0: #{atoc_actor_forward.5}
  #allocation0 [shape = 'u32[]', space=smem, size = 0x4, offset = 0x4, fixed_abs, tag = 'smem constant byte address 0x4 - core index']
  #allocation1 [shape = 'u32[72,128]{1,0:T(1,128)}', space=vmem, size = 0x9000, scoped, tag = 'internal scratch']
  %s0 = inlined_call_operand.vmem [shape: f32[8,16], index: 0, kind: input, shape index: {}]
  %s1 = inlined_call_operand.vmem [shape: f32[8,16], index: 1, kind: input, shape index: {}]
  %s2 = inlined_call_operand.vmem [shape: f32[16,16], index: 2, kind: input, shape index: {}]
  %s3 = inlined_call_operand.vmem [shape: f32[16,16], index: 3, kind: input, shape index: {}]
  %s4 = inlined_call_operand.vmem [shape: f32[1,16], index: 4, kind: input, shape index: {}]
  %s5 = inlined_call_operand.vmem [shape: f32[16,16], index: 5, kind: input, shape index: {}]
  %s6 = inlined_call_operand.vmem [shape: f32[1,16], index: 6, kind: input, shape index: {}]
  %s7 = inlined_call_operand.vmem [shape: f32[16,16], index: 7, kind: input, shape index: {}]
  %s8 = inlined_call_operand.vmem [shape: f32[1,16], index: 8, kind: input, shape index: {}]
  %s9 = inlined_call_operand.vmem [shape: f32[16,8], index: 9, kind: input, shape index: {}]
  %s10 = inlined_call_operand.vmem [shape: f32[1,8], index: 10, kind: input, shape index: {}]
  %s11 = inlined_call_operand.hbm [shape: f32[8,8], index: 11, kind: output, shape index: {}]
  %s12 = sld [smem:[#allocation0]]
  $region54: #{atoc_actor_forward.5} parent=0
    _
  %s14 = ssub.s32 1, %s12
  %s15 = scalar_select 0, %s14, %s12
  $region1: #{atoc_actor_forward.5} parent=0
    #allocation2 [shape = 'u8[4096]{0}', space=vmem, size = 0x1000, scoped, tag = 'output window, operand 0, single buffered']
    #allocation3 [shape = 's32[1]{0}', space=sflag, size = 0x4, scoped, tag = 'scoped memory for atoc_actor_forward.5']
    %16 = vsyncpa [#allocation3], 0
    // Predicated region
    $region2: #{atoc_actor_forward.5} parent=1 // pred_check
      _
    $region3: #{atoc_actor_forward.5} parent=1 // pred_check_branch
      %18 = sbr.rel (0) target = $region5
    $region4: #{atoc_actor_forward.5} parent=1 // pred_region
      _
    $region5: #{atoc_actor_forward.5} parent=1 // pred_fallthru
      _
    // Predicated region
    $region6: #{atoc_actor_forward.5} parent=1 // pred_check
      _
    $region7: #{atoc_actor_forward.5} parent=1 // pred_check_branch
      %20 = sbr.rel (0) target = $region9
    $region8: #{atoc_actor_forward.5} parent=1 // pred_region
      _
    $region9: #{atoc_actor_forward.5} parent=1 // pred_fallthru
      _
    // Predicated region
    $region10: #{atoc_actor_forward.5} parent=1 // pred_check
      _
    $region11: #{atoc_actor_forward.5} parent=1 // pred_check_branch
      %22 = sbr.rel (0) target = $region13
    $region12: #{atoc_actor_forward.5} parent=1 // pred_region
      _
    $region13: #{atoc_actor_forward.5} parent=1 // pred_fallthru
      _
    // Predicated region
    $region14: #{atoc_actor_forward.5} parent=1 // pred_check
      _
    $region15: #{atoc_actor_forward.5} parent=1 // pred_check_branch
      %24 = sbr.rel (0) target = $region17
    $region16: #{atoc_actor_forward.5} parent=1 // pred_region
      _
    $region17: #{atoc_actor_forward.5} parent=1 // pred_fallthru
      _
    // Predicated region
    $region18: #{atoc_actor_forward.5} parent=1 // pred_check
      _
    $region19: #{atoc_actor_forward.5} parent=1 // pred_check_branch
      %26 = sbr.rel (0) target = $region21
    $region20: #{atoc_actor_forward.5} parent=1 // pred_region
      _
    $region21: #{atoc_actor_forward.5} parent=1 // pred_fallthru
      _
    // Predicated region
    $region22: #{atoc_actor_forward.5} parent=1 // pred_check
      _
    $region23: #{atoc_actor_forward.5} parent=1 // pred_check_branch
      %28 = sbr.rel (0) target = $region25
    $region24: #{atoc_actor_forward.5} parent=1 // pred_region
      _
    $region25: #{atoc_actor_forward.5} parent=1 // pred_fallthru
      _
    // Predicated region
    $region26: #{atoc_actor_forward.5} parent=1 // pred_check
      _
    $region27: #{atoc_actor_forward.5} parent=1 // pred_check_branch
      %30 = sbr.rel (0) target = $region29
    $region28: #{atoc_actor_forward.5} parent=1 // pred_region
      _
    $region29: #{atoc_actor_forward.5} parent=1 // pred_fallthru
      _
    // Predicated region
    $region30: #{atoc_actor_forward.5} parent=1 // pred_check
      _
    $region31: #{atoc_actor_forward.5} parent=1 // pred_check_branch
      %32 = sbr.rel (0) target = $region33
    $region32: #{atoc_actor_forward.5} parent=1 // pred_region
      _
    $region33: #{atoc_actor_forward.5} parent=1 // pred_fallthru
      _
    // Predicated region
    $region34: #{atoc_actor_forward.5} parent=1 // pred_check
      _
    $region35: #{atoc_actor_forward.5} parent=1 // pred_check_branch
      %34 = sbr.rel (0) target = $region37
    $region36: #{atoc_actor_forward.5} parent=1 // pred_region
      _
    $region37: #{atoc_actor_forward.5} parent=1 // pred_fallthru
      _
    // Predicated region
    $region38: #{atoc_actor_forward.5} parent=1 // pred_check
      _
    $region39: #{atoc_actor_forward.5} parent=1 // pred_check_branch
      %36 = sbr.rel (0) target = $region41
    $region40: #{atoc_actor_forward.5} parent=1 // pred_region
      _
    $region41: #{atoc_actor_forward.5} parent=1 // pred_fallthru
      _
    // Predicated region
    $region42: #{atoc_actor_forward.5} parent=1 // pred_check
      _
    $region43: #{atoc_actor_forward.5} parent=1 // pred_check_branch
      %38 = sbr.rel (0) target = $region45
    $region44: #{atoc_actor_forward.5} parent=1 // pred_region
      _
    $region45: #{atoc_actor_forward.5} parent=1 // pred_fallthru
      _
    %v39 = vld [vmem:[%s0] sm:$0xff]
    %v40 = vld [vmem:[%s2] sm:$0xff]
    %v41 = vld [vmem:[%s2 + $0x8] sm:$0xff]
    %v42 = vld [vmem:[%s1] sm:$0xff]
    %v43 = vld [vmem:[%s3] sm:$0xff]
    %v44 = vld [vmem:[%s3 + $0x8] sm:$0xff]
    %vm45 = vcmask 130048
    %v47 = vsel %vm45, %v42, 0
    %49 = vmatpush.msra.mxu0 0.0
    %50 = vmatpush.msra.mxu0 0.0
    %51 = vmatpush.msra.mxu0 0.0
    %52 = vmatpush.msra.mxu0 0.0
    %53 = vmatpush.msra.mxu0 0.0
    %54 = vmatpush.msra.mxu0 0.0
    %55 = vmatpush.msra.mxu0 0.0
    %56 = vmatpush.msra.mxu0 0.0
    %57 = vmatpush.msra.mxu0 0.0
    %58 = vmatpush.msra.mxu0 0.0
    %59 = vmatpush.msra.mxu0 0.0
    %60 = vmatpush.msra.mxu0 0.0
    %61 = vmatpush.msra.mxu0 0.0
    %62 = vmatpush.msra.mxu0 0.0
    %63 = vmatpush.msra.mxu0 %v44
    %64 = vmatpush.msra.mxu0 %v43
    %65 = vmatmul.f32.gmra.mxu0 %v47
    %v66 = vpop.f32.mrf.mxu0
    %v67 = vadd.f32 0.0, %v66
    %68 = vdwg.mxu0
    %v70 = vsel %vm45, %v39, 0
    %72 = vmatpush.msra.mxu0 0.0
    %73 = vmatpush.msra.mxu0 0.0
    %74 = vmatpush.msra.mxu0 0.0
    %75 = vmatpush.msra.mxu0 0.0
    %76 = vmatpush.msra.mxu0 0.0
    %77 = vmatpush.msra.mxu0 0.0
    %78 = vmatpush.msra.mxu0 0.0
    %79 = vmatpush.msra.mxu0 0.0
    %80 = vmatpush.msra.mxu0 0.0
    %81 = vmatpush.msra.mxu0 0.0
    %82 = vmatpush.msra.mxu0 0.0
    %83 = vmatpush.msra.mxu0 0.0
    %84 = vmatpush.msra.mxu0 0.0
    %85 = vmatpush.msra.mxu0 0.0
    %86 = vmatpush.msra.mxu0 %v41
    %87 = vmatpush.msra.mxu0 %v40
    %88 = vmatmul.f32.gmra.mxu0 %v70
    %v89 = vpop.f32.mrf.mxu0
    %v90 = vadd.f32 %v67, %v89
    %91 = vdwg.mxu0
    %v92 = vld [vmem:[%s4] sm:$0x1]
    %v94 = vperm.slane %v92, 0
    %v96 = vadd.f32 %v90, %v94
    %v97 = vmax.f32 %v96, 0.0
    %v98 = vld [vmem:[%s5] sm:$0xff]
    %v99 = vld [vmem:[%s5 + $0x8] sm:$0xff]
    %v100 = vld [vmem:[%s6] sm:$0x1]
    %v102 = vperm.slane %v100, 0
    %v105 = vsel %vm45, %v97, 0
    %107 = vmatpush.msra.mxu0 0.0
    %108 = vmatpush.msra.mxu0 0.0
    %109 = vmatpush.msra.mxu0 0.0
    %110 = vmatpush.msra.mxu0 0.0
    %111 = vmatpush.msra.mxu0 0.0
    %112 = vmatpush.msra.mxu0 0.0
    %113 = vmatpush.msra.mxu0 0.0
    %114 = vmatpush.msra.mxu0 0.0
    %115 = vmatpush.msra.mxu0 0.0
    %116 = vmatpush.msra.mxu0 0.0
    %117 = vmatpush.msra.mxu0 0.0
    %118 = vmatpush.msra.mxu0 0.0
    %119 = vmatpush.msra.mxu0 0.0
    %120 = vmatpush.msra.mxu0 0.0
    %121 = vmatpush.msra.mxu0 %v99
    %122 = vmatpush.msra.mxu0 %v98
    %123 = vmatmul.f32.gmra.mxu0 %v105
    %v124 = vpop.f32.mrf.mxu0
    %v125 = vadd.f32 %v102, %v124
    %126 = vdwg.mxu0
    %v127 = vmax.f32 %v125, 0.0
    %v128 = vld [vmem:[%s7] sm:$0xff]
    %v129 = vld [vmem:[%s7 + $0x8] sm:$0xff]
    %v130 = vld [vmem:[%s8] sm:$0x1]
    %v132 = vperm.slane %v130, 0
    %v135 = vsel %vm45, %v127, 0
    %137 = vmatpush.msra.mxu0 0.0
    %138 = vmatpush.msra.mxu0 0.0
    %139 = vmatpush.msra.mxu0 0.0
    %140 = vmatpush.msra.mxu0 0.0
    %141 = vmatpush.msra.mxu0 0.0
    %142 = vmatpush.msra.mxu0 0.0
    %143 = vmatpush.msra.mxu0 0.0
    %144 = vmatpush.msra.mxu0 0.0
    %145 = vmatpush.msra.mxu0 0.0
    %146 = vmatpush.msra.mxu0 0.0
    %147 = vmatpush.msra.mxu0 0.0
    %148 = vmatpush.msra.mxu0 0.0
    %149 = vmatpush.msra.mxu0 0.0
    %150 = vmatpush.msra.mxu0 0.0
    %151 = vmatpush.msra.mxu0 %v129
    %152 = vmatpush.msra.mxu0 %v128
    %153 = vmatmul.f32.gmra.mxu0 %v135
    %v154 = vpop.f32.mrf.mxu0
    %v155 = vadd.f32 %v132, %v154
    %156 = vdwg.mxu0
    %v157 = vmax.f32 %v155, 0.0
    %v158 = vld [vmem:[%s9] sm:$0xff]
    %v159 = vld [vmem:[%s9 + $0x8] sm:$0xff]
    %v160 = vld [vmem:[%s10] sm:$0x1]
    %v162 = vperm.slane %v160, 0
    %v165 = vsel %vm45, %v157, 0
    %167 = vmatpush.msra.mxu0 0.0
    %168 = vmatpush.msra.mxu0 0.0
    %169 = vmatpush.msra.mxu0 0.0
    %170 = vmatpush.msra.mxu0 0.0
    %171 = vmatpush.msra.mxu0 0.0
    %172 = vmatpush.msra.mxu0 0.0
    %173 = vmatpush.msra.mxu0 0.0
    %174 = vmatpush.msra.mxu0 0.0
    %175 = vmatpush.msra.mxu0 0.0
    %176 = vmatpush.msra.mxu0 0.0
    %177 = vmatpush.msra.mxu0 0.0
    %178 = vmatpush.msra.mxu0 0.0
    %179 = vmatpush.msra.mxu0 0.0
    %180 = vmatpush.msra.mxu0 0.0
    %181 = vmatpush.msra.mxu0 %v159
    %182 = vmatpush.msra.mxu0 %v158
    %183 = vmatmul.f32.gmra.mxu0 %v165
    %v184 = vpop.f32.mrf.mxu0
    %v185 = vadd.f32 %v162, %v184
    %186 = vdwg.mxu0
    %v187 = vtanh.pop %v185
    %vm188 = vcmask 64512
    %189 = vst.msk [vmem:[#allocation2] sm:$0xff] %vm188, %v187
    // Predicated region
    $region46: #{atoc_actor_forward.5} parent=1 // pred_check
      _
    $region47: #{atoc_actor_forward.5} parent=1 // pred_check_branch
      %191 = sbr.rel (0) target = $region49
    $region48: #{atoc_actor_forward.5} parent=1 // pred_region
      %193 = vsyncadd [#allocation3], 0
      %s195 = sshll.u32 [#allocation2], 4
      %s196 = int_to_ptr.vmem [resolvable:$true] %s195
      %s197 = sshll.u32 %s11, 4
      %s198 = int_to_ptr.hbm [resolvable:$true] %s197
      %200 = dma.vmem_to_hbm [thread:$0]  %s196, 128, %s198, [#allocation3]
    $region49: #{atoc_actor_forward.5} parent=1 // pred_fallthru
      _
    // Predicated region
    $region50: #{atoc_actor_forward.5} parent=1 // pred_check
      _
    $region51: #{atoc_actor_forward.5} parent=1 // pred_check_branch
      %202 = sbr.rel (0) target = $region53
    $region52: #{atoc_actor_forward.5} parent=1 // pred_region
      %204 = dma.done [#allocation3], 128
    $region53: #{atoc_actor_forward.5} parent=1 // pred_fallthru
      _
    %205 = vsyncpa [#allocation3], 1

</llo_original>
